<compile_context>
chip_gen: v5e
topology: v5e:2x2
jax: 0.10.0
libtpu: 0.0.40
codegen_flags: <defaults>
</compile_context>

<pallas_src>
import math
import functools

import jax
import jax.numpy as jnp
from jax.experimental import pallas as pl
from jax.experimental.pallas import tpu as pltpu


# ----------------------------------------------------------------------------
# In-kernel helpers (f32 element-wise math, guaranteed Mosaic lowerings only)
# ----------------------------------------------------------------------------
def _layer_norm(x, gamma, beta, eps=1e-12):
    # matches the PyTorch module: unbiased=False variance, eps added to var.
    mean = jnp.mean(x, axis=-1, keepdims=True)
    cent = x - mean
    var = jnp.mean(cent * cent, axis=-1, keepdims=True)
    return cent * jax.lax.rsqrt(var + eps) * gamma + beta


def _erf_approx(x):
    # Abramowitz & Stegun 7.1.26 polynomial.  Divide routed to the EUP
    # (pl.reciprocal) so it shares the transcendental slot with the exp.
    a1, a2, a3, a4, a5 = 0.254829592, -0.284496736, 1.421413741, -1.453152027, 1.061405429
    p = 0.3275911
    sign = jnp.where(x >= 0.0, 1.0, -1.0).astype(x.dtype)
    ax = x * sign
    t = pl.reciprocal(1.0 + p * ax, approx=True)
    poly = ((((a5 * t + a4) * t + a3) * t + a2) * t + a1) * t
    return sign * (1.0 - poly * jnp.exp(-ax * ax))


def _gelu_exact(x):
    # matches torch.nn.GELU() (erf formulation) up to the approx-reciprocal error.
    return 0.5 * x * (1.0 + _erf_approx(x * (1.0 / math.sqrt(2.0))))


# ----------------------------------------------------------------------------
# Fused TransformerBlock kernel: one grid step = `bb` folded batch elements
# ----------------------------------------------------------------------------
def _transformer_block_kernel(
    x_ref, wqkv_ref, wo_ref, mask_ref,
    g1_ref, b1_ref, g2_ref, b2_ref,
    w1_ref, bias1_ref, w2_ref, bias2_ref,
    o_ref, *, num_heads):
    f32 = jnp.float32
    bf16 = jnp.bfloat16

    x = x_ref[...]                                   # (bb, S, D) f32
    bb, S, D = x.shape
    dk = D // num_heads
    GH = num_heads * bb                              # head x folded-batch groups
    G0 = 3 * num_heads

    # ---- LayerNorm 1 (f32) --------------------------------------------------
    xn1 = _layer_norm(x, g1_ref[...], b1_ref[...])   # (bb, S, D)
    xb = xn1.astype(bf16)

    # ---- head-major Q/K/V: leading-batch matmul, no per-head lane slicing ---
    # wqkv_ref: (3H, D, dk) bf16, q-heads|k-heads|v-heads, scale folded into q.
    wqkv = wqkv_ref[...]
    xg = jnp.broadcast_to(xb[None], (G0, bb, S, D)).reshape(G0 * bb, S, D)
    wg = jnp.broadcast_to(wqkv[:, None], (G0, bb, D, dk)).reshape(G0 * bb, D, dk)
    qkv = jnp.einsum("gsd,gde->gse", xg, wg,
                     preferred_element_type=f32)     # (3*GH, S, dk) f32 accum
    qkv = qkv.astype(bf16)
    q = qkv[:GH]                                     # (GH, S, dk), g = h*bb + b
    k = qkv[GH:2 * GH]
    v = qkv[2 * GH:]

    # ---- causal attention, all (head, batch) groups in one batched matmul ---
    scores = jnp.einsum("gqd,gkd->gqk", q, k,
                        preferred_element_type=f32)  # (GH, S, S) f32
    scores = scores + mask_ref[...]                  # hoisted additive causal bias
    m = jnp.max(scores, axis=-1, keepdims=True)      # f32 softmax statistics
    p = jnp.exp(scores - m)
    denom = jnp.sum(p, axis=-1, keepdims=True)
    p = (p * pl.reciprocal(denom, approx=True)).astype(bf16)   # EUP reciprocal
    ctx = jnp.einsum("gqk,gkd->gqd", p, v,
                     preferred_element_type=f32)     # (GH, S, dk) f32

    # ---- output projection: per-head (dk, D) weights, then sum over heads ---
    # (avoids re-interleaving heads along the lane dim; fine for small dk=8)
    wo = wo_ref[...]                                 # (H, dk, D) bf16
    wo_g = jnp.broadcast_to(wo[:, None], (num_heads, bb, dk, D)).reshape(GH, dk, D)
    attn = jnp.einsum("gsd,gde->gse", ctx.astype(bf16), wo_g,
                      preferred_element_type=f32)    # (GH, S, D) f32
    attn = attn.reshape(num_heads, bb, S, D).sum(axis=0)        # (bb, S, D)

    # residual 1 (dropout1 == identity in eval mode)
    x1 = x + attn

    # ---- LayerNorm 2 + FeedForward (row-flattened matmuls) -------------------
    xn2 = _layer_norm(x1, g2_ref[...], b2_ref[...])
    xf = xn2.reshape(bb * S, D).astype(bf16)         # (bb*S, D): denser sublanes
    h = jnp.dot(xf, w1_ref[...],
                preferred_element_type=f32) + bias1_ref[...]    # (bb*S, d_ff)
    h = _gelu_exact(h)
    ff = jnp.dot(h.astype(bf16), w2_ref[...],
                 preferred_element_type=f32) + bias2_ref[...]   # (bb*S, D)

    # residual 2 (dropout2 == identity in eval mode)
    o_ref[...] = (x1 + ff.reshape(bb, S, D)).astype(o_ref.dtype)


# ----------------------------------------------------------------------------
# Host wrapper
# ----------------------------------------------------------------------------
def transformer_block(x, params, *, num_heads, batch_block=None):
    """x: (B, S, D) float32. params: dict of f32 weights (see __main__)."""
    B, S, D = x.shape
    assert D % num_heads == 0
    dk = D // num_heads
    d_ff = params["w1"].shape[1]

    if batch_block is None:
        # Fold batch rows per grid step to amortize the ~0.35us per-step
        # pipeline overhead, but keep >= 2 grid steps (marked "parallel") so
        # both of v7x's TensorCores get work.  v5e/v6e: extra step is free.
        batch_block = B // 2 if (B >= 2 and B % 2 == 0) else B
    assert B % batch_block == 0

    # One-time host-side weight prep:
    #  - head-major QKV weight (3H, D, dk) with 1/sqrt(d_k) folded into W_q,
    #  - W_o pre-split per head to (H, dk, D),
    #  - bf16 matmul weights (f32 accumulation happens in-kernel),
    #  - additive causal mask bias (S, S), built once.
    def _heads(w):                                            # (D, D) -> (H, D, dk)
        return w.reshape(D, num_heads, dk).transpose(1, 0, 2)

    w_qkv_h = jnp.concatenate(
        [_heads(params["w_q"] * (1.0 / math.sqrt(dk))),
         _heads(params["w_k"]),
         _heads(params["w_v"])],
        axis=0).astype(jnp.bfloat16)                          # (3H, D, dk)
    w_o_h = params["w_o"].reshape(num_heads, dk, D).astype(jnp.bfloat16)
    w1 = params["w1"].astype(jnp.bfloat16)                    # (D, d_ff)
    w2 = params["w2"].astype(jnp.bfloat16)                    # (d_ff, D)

    gamma1 = params["gamma1"].reshape(1, D).astype(jnp.float32)
    beta1 = params["beta1"].reshape(1, D).astype(jnp.float32)
    gamma2 = params["gamma2"].reshape(1, D).astype(jnp.float32)
    beta2 = params["beta2"].reshape(1, D).astype(jnp.float32)
    bias1 = params["b1"].reshape(1, d_ff).astype(jnp.float32)
    bias2 = params["b2"].reshape(1, D).astype(jnp.float32)

    row = jnp.arange(S, dtype=jnp.int32)[:, None]
    col = jnp.arange(S, dtype=jnp.int32)[None, :]
    mask_bias = jnp.where(col <= row, 0.0, -1e30).astype(jnp.float32)   # (S, S)

    kernel = functools.partial(_transformer_block_kernel, num_heads=num_heads)

    def _rep(shape):
        # Constant-index block: resident in VMEM, never re-DMAed; single buffer.
        nd = len(shape)
        return pl.BlockSpec(shape, lambda i: (0,) * nd,
                            pipeline_mode=pl.Buffered(1))

    x_spec = pl.BlockSpec((batch_block, S, D), lambda i: (i, 0, 0))

    return pl.pallas_call(
        kernel,
        out_shape=jax.ShapeDtypeStruct((B, S, D), jnp.float32),
        grid_spec=pltpu.PrefetchScalarGridSpec(
            num_scalar_prefetch=0,
            grid=(B // batch_block,),
            in_specs=[
                x_spec,                                     # x (bb, S, D)
                _rep((3 * num_heads, D, dk)),               # head-major W_qkv
                _rep((num_heads, dk, D)),                   # per-head W_o
                _rep((S, S)),                               # causal mask bias
                _rep((1, D)), _rep((1, D)),                 # gamma1, beta1
                _rep((1, D)), _rep((1, D)),                 # gamma2, beta2
                _rep((D, d_ff)), _rep((1, d_ff)),           # w1, b1
                _rep((d_ff, D)), _rep((1, D)),              # w2, b2
            ],
            out_specs=x_spec,
        ),
        compiler_params=pltpu.CompilerParams(
            dimension_semantics=("parallel",),
            # Explicit scoped-VMEM budget: safe on every generation incl.
            # v7x's 64 MiB physical VMEM; plenty for these block sizes.
            vmem_limit_bytes=32 * 1024 * 1024,
        ),
    )(x, w_qkv_h, w_o_h, mask_bias,
      gamma1, beta1, gamma2, beta2, w1, bias1, w2, bias2)


# ----------------------------------------------------------------------------
# Pure-JAX reference (f32), mirrors the PyTorch forward in eval mode
# ----------------------------------------------------------------------------
def _reference_block(x, params, *, num_heads):
    B, S, D = x.shape
    dk = D // num_heads

    def layer_norm(h, g, b, eps=1e-12):
        mean = h.mean(-1, keepdims=True)
        var = ((h - mean) ** 2).mean(-1, keepdims=True)
        return g * (h - mean) / jnp.sqrt(var + eps) + b

    xn = layer_norm(x, params["gamma1"], params["beta1"])
    q = (xn @ params["w_q"]).reshape(B, S, num_heads, dk).transpose(0, 2, 1, 3)
    k = (xn @ params["w_k"]).reshape(B, S, num_heads, dk).transpose(0, 2, 1, 3)
    v = (xn @ params["w_v"]).reshape(B, S, num_heads, dk).transpose(0, 2, 1, 3)
    scores = jnp.einsum("bhqd,bhkd->bhqk", q, k) / math.sqrt(dk)
    causal = jnp.triu(jnp.ones((S, S), dtype=bool), k=1)
    scores = jnp.where(causal[None, None], -jnp.inf, scores)
    attn = jax.nn.softmax(scores, axis=-1)
    ctx = jnp.einsum("bhqk,bhkd->bhqd", attn, v).transpose(0, 2, 1, 3).reshape(B, S, D)
    x = x + ctx @ params["w_o"]

    xn2 = layer_norm(x, params["gamma2"], params["beta2"])
    h = jax.nn.gelu(xn2 @ params["w1"] + params["b1"], approximate=False)
    return x + h @ params["w2"] + params["b2"]


if __name__ == "__main__":
    B, S, D, H, D_FF = 4, 8, 32, 4, 64

    key = jax.random.PRNGKey(0)
    ks = jax.random.split(key, 13)
    scale = 1.0 / math.sqrt(D)

    x = jax.random.normal(ks[0], (B, S, D), jnp.float32)
    params = dict(
        w_q=jax.random.normal(ks[1], (D, D), jnp.float32) * scale,
        w_k=jax.random.normal(ks[2], (D, D), jnp.float32) * scale,
        w_v=jax.random.normal(ks[3], (D, D), jnp.float32) * scale,
        w_o=jax.random.normal(ks[4], (D, D), jnp.float32) * scale,
        gamma1=1.0 + 0.1 * jax.random.normal(ks[5], (D,), jnp.float32),
        beta1=0.1 * jax.random.normal(ks[6], (D,), jnp.float32),
        gamma2=1.0 + 0.1 * jax.random.normal(ks[7], (D,), jnp.float32),
        beta2=0.1 * jax.random.normal(ks[8], (D,), jnp.float32),
        w1=jax.random.normal(ks[9], (D, D_FF), jnp.float32) * math.sqrt(2.0 / (D + D_FF)),
        b1=0.1 * jax.random.normal(ks[10], (D_FF,), jnp.float32),
        w2=jax.random.normal(ks[11], (D_FF, D), jnp.float32) * math.sqrt(2.0 / (D + D_FF)),
        b2=0.1 * jax.random.normal(ks[12], (D,), jnp.float32),
    )

    out = transformer_block(x, params, num_heads=H)
    out = jax.block_until_ready(out)

    ref = _reference_block(x, params, num_heads=H)
    assert out.shape == (B, S, D)
    # tolerance reflects bf16 MXU operands (f32 accumulation / f32 softmax & LN)
    max_err = float(jnp.max(jnp.abs(out - ref)))
    mean_err = float(jnp.mean(jnp.abs(out - ref)))
    assert max_err < 1e-1 and mean_err < 2e-2, f"mismatch: max={max_err}, mean={mean_err}"

    print("KERNEL_OK")
</pallas_src>

<mosaic_0001>
module attributes {stable_mosaic.version = 11 : i64} {
  func.func @_transformer_block_kernel(%arg0: i32, %arg1: memref<2x8x32xf32, #tpu.memory_space<vmem>>, %arg2: memref<12x32x8xbf16, #tpu.memory_space<vmem>>, %arg3: memref<4x8x32xbf16, #tpu.memory_space<vmem>>, %arg4: memref<8x8xf32, #tpu.memory_space<vmem>>, %arg5: memref<1x32xf32, #tpu.memory_space<vmem>>, %arg6: memref<1x32xf32, #tpu.memory_space<vmem>>, %arg7: memref<1x32xf32, #tpu.memory_space<vmem>>, %arg8: memref<1x32xf32, #tpu.memory_space<vmem>>, %arg9: memref<32x64xbf16, #tpu.memory_space<vmem>>, %arg10: memref<1x64xf32, #tpu.memory_space<vmem>>, %arg11: memref<64x32xbf16, #tpu.memory_space<vmem>>, %arg12: memref<1x32xf32, #tpu.memory_space<vmem>>, %arg13: memref<2x8x32xf32, #tpu.memory_space<vmem>>) attributes {dimension_semantics = [#tpu.dimension_semantics<parallel>], iteration_bounds = array<i64: 2>, scalar_prefetch = 0 : i64, scratch_operands = 0 : i64, tpu.core_type = #tpu.core_type<tc>, window_params = [{transform_indices = @transform_0, window_bounds = array<i64: 2, 8, 32>}, {pipeline_mode = #tpu.pipeline_mode<synchronous>, transform_indices = @transform_1, window_bounds = array<i64: 12, 32, 8>}, {pipeline_mode = #tpu.pipeline_mode<synchronous>, transform_indices = @transform_2, window_bounds = array<i64: 4, 8, 32>}, {pipeline_mode = #tpu.pipeline_mode<synchronous>, transform_indices = @transform_3, window_bounds = array<i64: 8, 8>}, {pipeline_mode = #tpu.pipeline_mode<synchronous>, transform_indices = @transform_4, window_bounds = array<i64: 1, 32>}, {pipeline_mode = #tpu.pipeline_mode<synchronous>, transform_indices = @transform_5, window_bounds = array<i64: 1, 32>}, {pipeline_mode = #tpu.pipeline_mode<synchronous>, transform_indices = @transform_6, window_bounds = array<i64: 1, 32>}, {pipeline_mode = #tpu.pipeline_mode<synchronous>, transform_indices = @transform_7, window_bounds = array<i64: 1, 32>}, {pipeline_mode = #tpu.pipeline_mode<synchronous>, transform_indices = @transform_8, window_bounds = array<i64: 32, 64>}, {pipeline_mode = #tpu.pipeline_mode<synchronous>, transform_indices = @transform_9, window_bounds = array<i64: 1, 64>}, {pipeline_mode = #tpu.pipeline_mode<synchronous>, transform_indices = @transform_10, window_bounds = array<i64: 64, 32>}, {pipeline_mode = #tpu.pipeline_mode<synchronous>, transform_indices = @transform_11, window_bounds = array<i64: 1, 32>}, {transform_indices = @transform_12, window_bounds = array<i64: 2, 8, 32>}]} {
    %c0 = arith.constant 0 : index
    %c0_0 = arith.constant 0 : index
    %c0_1 = arith.constant 0 : index
    %0 = vector.load %arg1[%c0, %c0_0, %c0_1] : memref<2x8x32xf32, #tpu.memory_space<vmem>>, vector<2x8x32xf32>
    %c0_2 = arith.constant 0 : index
    %c0_3 = arith.constant 0 : index
    %1 = vector.load %arg5[%c0_2, %c0_3] : memref<1x32xf32, #tpu.memory_space<vmem>>, vector<1x32xf32>
    %c0_4 = arith.constant 0 : index
    %c0_5 = arith.constant 0 : index
    %2 = vector.load %arg6[%c0_4, %c0_5] : memref<1x32xf32, #tpu.memory_space<vmem>>, vector<1x32xf32>
    %cst = arith.constant dense<0.000000e+00> : vector<2x8xf32>
    %3 = vector.multi_reduction <add>, %0, %cst [2] : vector<2x8x32xf32> to vector<2x8xf32>
    %4 = vector.shape_cast %3 : vector<2x8xf32> to vector<2x8x1xf32>
    %cst_6 = arith.constant 3.200000e+01 : f32
    %5 = vector.broadcast %cst_6 : f32 to vector<2x8x1xf32>
    %6 = arith.divf %4, %5 : vector<2x8x1xf32>
    %7 = vector.broadcast %6 : vector<2x8x1xf32> to vector<2x8x32xf32>
    %8 = arith.subf %0, %7 : vector<2x8x32xf32>
    %9 = arith.mulf %8, %8 : vector<2x8x32xf32>
    %cst_7 = arith.constant dense<0.000000e+00> : vector<2x8xf32>
    %10 = vector.multi_reduction <add>, %9, %cst_7 [2] : vector<2x8x32xf32> to vector<2x8xf32>
    %11 = vector.shape_cast %10 : vector<2x8xf32> to vector<2x8x1xf32>
    %cst_8 = arith.constant 3.200000e+01 : f32
    %12 = vector.broadcast %cst_8 : f32 to vector<2x8x1xf32>
    %13 = arith.divf %11, %12 : vector<2x8x1xf32>
    %cst_9 = arith.constant 9.99999996E-13 : f32
    %14 = vector.broadcast %cst_9 : f32 to vector<2x8x1xf32>
    %15 = arith.addf %13, %14 : vector<2x8x1xf32>
    %16 = math.rsqrt %15 : vector<2x8x1xf32>
    %17 = vector.broadcast %16 : vector<2x8x1xf32> to vector<2x8x32xf32>
    %18 = arith.mulf %8, %17 : vector<2x8x32xf32>
    %19 = vector.shape_cast %1 : vector<1x32xf32> to vector<1x1x32xf32>
    %20 = vector.broadcast %19 : vector<1x1x32xf32> to vector<2x8x32xf32>
    %21 = arith.mulf %18, %20 : vector<2x8x32xf32>
    %22 = vector.shape_cast %2 : vector<1x32xf32> to vector<1x1x32xf32>
    %23 = vector.broadcast %22 : vector<1x1x32xf32> to vector<2x8x32xf32>
    %24 = arith.addf %21, %23 : vector<2x8x32xf32>
    %25 = arith.truncf %24 : vector<2x8x32xf32> to vector<2x8x32xbf16>
    %c0_10 = arith.constant 0 : index
    %c0_11 = arith.constant 0 : index
    %c0_12 = arith.constant 0 : index
    %26 = vector.load %arg2[%c0_10, %c0_11, %c0_12] : memref<12x32x8xbf16, #tpu.memory_space<vmem>>, vector<12x32x8xbf16>
    %27 = vector.shape_cast %25 : vector<2x8x32xbf16> to vector<1x2x8x32xbf16>
    %28 = vector.shape_cast %27 : vector<1x2x8x32xbf16> to vector<1x2x8x32xbf16>
    %29 = vector.broadcast %28 : vector<1x2x8x32xbf16> to vector<12x2x8x32xbf16>
    %30 = vector.shape_cast %29 : vector<12x2x8x32xbf16> to vector<24x8x32xbf16>
    %31 = vector.shape_cast %26 : vector<12x32x8xbf16> to vector<12x1x32x8xbf16>
    %32 = vector.shape_cast %31 : vector<12x1x32x8xbf16> to vector<12x1x32x8xbf16>
    %33 = vector.broadcast %32 : vector<12x1x32x8xbf16> to vector<12x2x32x8xbf16>
    %34 = vector.shape_cast %33 : vector<12x2x32x8xbf16> to vector<24x32x8xbf16>
    "tpu.trace_start"() <{level = 10 : i32, message = "gsd,gde->gse"}> : () -> ()
    %cst_13 = arith.constant dense<0.000000e+00> : vector<24x8x8xf32>
    %35 = tpu.matmul %30, %34, %cst_13 {dimension_numbers = #tpu.dot_dimension_numbers<[2], [1], [1], [2], [0, 0, 0, 1, 1, 2], [0], [0]>} : vector<24x8x32xbf16>, vector<24x32x8xbf16>, vector<24x8x8xf32> -> vector<24x8x8xf32>
    "tpu.trace_stop"() : () -> ()
    %36 = arith.truncf %35 : vector<24x8x8xf32> to vector<24x8x8xbf16>
    %37 = vector.extract_strided_slice %36 {offsets = [0, 0, 0], sizes = [8, 8, 8], strides = [1, 1, 1]} : vector<24x8x8xbf16> to vector<8x8x8xbf16>
    %38 = vector.extract_strided_slice %36 {offsets = [8, 0, 0], sizes = [8, 8, 8], strides = [1, 1, 1]} : vector<24x8x8xbf16> to vector<8x8x8xbf16>
    %39 = vector.extract_strided_slice %36 {offsets = [16, 0, 0], sizes = [8, 8, 8], strides = [1, 1, 1]} : vector<24x8x8xbf16> to vector<8x8x8xbf16>
    "tpu.trace_start"() <{level = 10 : i32, message = "gqd,gkd->gqk"}> : () -> ()
    %cst_14 = arith.constant dense<0.000000e+00> : vector<8x8x8xf32>
    %40 = tpu.matmul %37, %38, %cst_14 {dimension_numbers = #tpu.dot_dimension_numbers<[2], [2], [1], [1], [0, 0, 0, 1, 1, 1], [0], [0]>} : vector<8x8x8xbf16>, vector<8x8x8xbf16>, vector<8x8x8xf32> -> vector<8x8x8xf32>
    "tpu.trace_stop"() : () -> ()
    %c0_15 = arith.constant 0 : index
    %c0_16 = arith.constant 0 : index
    %41 = vector.load %arg4[%c0_15, %c0_16] : memref<8x8xf32, #tpu.memory_space<vmem>>, vector<8x8xf32>
    %42 = vector.shape_cast %41 : vector<8x8xf32> to vector<1x8x8xf32>
    %43 = vector.broadcast %42 : vector<1x8x8xf32> to vector<8x8x8xf32>
    %44 = arith.addf %40, %43 : vector<8x8x8xf32>
    %cst_17 = arith.constant dense<0xFF800000> : vector<8x8xf32>
    %45 = vector.multi_reduction <maximumf>, %44, %cst_17 [2] : vector<8x8x8xf32> to vector<8x8xf32>
    %46 = vector.shape_cast %45 : vector<8x8xf32> to vector<8x8x1xf32>
    %47 = vector.broadcast %46 : vector<8x8x1xf32> to vector<8x8x8xf32>
    %48 = arith.subf %44, %47 : vector<8x8x8xf32>
    %49 = math.exp %48 : vector<8x8x8xf32>
    %cst_18 = arith.constant dense<0.000000e+00> : vector<8x8xf32>
    %50 = vector.multi_reduction <add>, %49, %cst_18 [2] : vector<8x8x8xf32> to vector<8x8xf32>
    %51 = vector.shape_cast %50 : vector<8x8xf32> to vector<8x8x1xf32>
    %52 = tpu.reciprocal %51 {approx = true} : vector<8x8x1xf32> -> vector<8x8x1xf32>
    %53 = vector.broadcast %52 : vector<8x8x1xf32> to vector<8x8x8xf32>
    %54 = arith.mulf %49, %53 : vector<8x8x8xf32>
    %55 = arith.truncf %54 : vector<8x8x8xf32> to vector<8x8x8xbf16>
    "tpu.trace_start"() <{level = 10 : i32, message = "gqk,gkd->gqd"}> : () -> ()
    %cst_19 = arith.constant dense<0.000000e+00> : vector<8x8x8xf32>
    %56 = tpu.matmul %55, %39, %cst_19 {dimension_numbers = #tpu.dot_dimension_numbers<[2], [1], [1], [2], [0, 0, 0, 1, 1, 2], [0], [0]>} : vector<8x8x8xbf16>, vector<8x8x8xbf16>, vector<8x8x8xf32> -> vector<8x8x8xf32>
    "tpu.trace_stop"() : () -> ()
    %c0_20 = arith.constant 0 : index
    %c0_21 = arith.constant 0 : index
    %c0_22 = arith.constant 0 : index
    %57 = vector.load %arg3[%c0_20, %c0_21, %c0_22] : memref<4x8x32xbf16, #tpu.memory_space<vmem>>, vector<4x8x32xbf16>
    %58 = vector.shape_cast %57 : vector<4x8x32xbf16> to vector<4x1x8x32xbf16>
    %59 = vector.shape_cast %58 : vector<4x1x8x32xbf16> to vector<4x1x8x32xbf16>
    %60 = vector.broadcast %59 : vector<4x1x8x32xbf16> to vector<4x2x8x32xbf16>
    %61 = vector.shape_cast %60 : vector<4x2x8x32xbf16> to vector<8x8x32xbf16>
    %62 = arith.truncf %56 : vector<8x8x8xf32> to vector<8x8x8xbf16>
    "tpu.trace_start"() <{level = 10 : i32, message = "gsd,gde->gse"}> : () -> ()
    %cst_23 = arith.constant dense<0.000000e+00> : vector<8x8x32xf32>
    %63 = tpu.matmul %62, %61, %cst_23 {dimension_numbers = #tpu.dot_dimension_numbers<[2], [1], [1], [2], [0, 0, 0, 1, 1, 2], [0], [0]>} : vector<8x8x8xbf16>, vector<8x8x32xbf16>, vector<8x8x32xf32> -> vector<8x8x32xf32>
    "tpu.trace_stop"() : () -> ()
    %64 = vector.shape_cast %63 : vector<8x8x32xf32> to vector<4x2x8x32xf32>
    %cst_24 = arith.constant dense<0.000000e+00> : vector<2x8x32xf32>
    %65 = vector.multi_reduction <add>, %64, %cst_24 [0] : vector<4x2x8x32xf32> to vector<2x8x32xf32>
    %66 = arith.addf %0, %65 : vector<2x8x32xf32>
    %c0_25 = arith.constant 0 : index
    %c0_26 = arith.constant 0 : index
    %67 = vector.load %arg7[%c0_25, %c0_26] : memref<1x32xf32, #tpu.memory_space<vmem>>, vector<1x32xf32>
    %c0_27 = arith.constant 0 : index
    %c0_28 = arith.constant 0 : index
    %68 = vector.load %arg8[%c0_27, %c0_28] : memref<1x32xf32, #tpu.memory_space<vmem>>, vector<1x32xf32>
    %cst_29 = arith.constant dense<0.000000e+00> : vector<2x8xf32>
    %69 = vector.multi_reduction <add>, %66, %cst_29 [2] : vector<2x8x32xf32> to vector<2x8xf32>
    %70 = vector.shape_cast %69 : vector<2x8xf32> to vector<2x8x1xf32>
    %cst_30 = arith.constant 3.200000e+01 : f32
    %71 = vector.broadcast %cst_30 : f32 to vector<2x8x1xf32>
    %72 = arith.divf %70, %71 : vector<2x8x1xf32>
    %73 = vector.broadcast %72 : vector<2x8x1xf32> to vector<2x8x32xf32>
    %74 = arith.subf %66, %73 : vector<2x8x32xf32>
    %75 = arith.mulf %74, %74 : vector<2x8x32xf32>
    %cst_31 = arith.constant dense<0.000000e+00> : vector<2x8xf32>
    %76 = vector.multi_reduction <add>, %75, %cst_31 [2] : vector<2x8x32xf32> to vector<2x8xf32>
    %77 = vector.shape_cast %76 : vector<2x8xf32> to vector<2x8x1xf32>
    %cst_32 = arith.constant 3.200000e+01 : f32
    %78 = vector.broadcast %cst_32 : f32 to vector<2x8x1xf32>
    %79 = arith.divf %77, %78 : vector<2x8x1xf32>
    %cst_33 = arith.constant 9.99999996E-13 : f32
    %80 = vector.broadcast %cst_33 : f32 to vector<2x8x1xf32>
    %81 = arith.addf %79, %80 : vector<2x8x1xf32>
    %82 = math.rsqrt %81 : vector<2x8x1xf32>
    %83 = vector.broadcast %82 : vector<2x8x1xf32> to vector<2x8x32xf32>
    %84 = arith.mulf %74, %83 : vector<2x8x32xf32>
    %85 = vector.shape_cast %67 : vector<1x32xf32> to vector<1x1x32xf32>
    %86 = vector.broadcast %85 : vector<1x1x32xf32> to vector<2x8x32xf32>
    %87 = arith.mulf %84, %86 : vector<2x8x32xf32>
    %88 = vector.shape_cast %68 : vector<1x32xf32> to vector<1x1x32xf32>
    %89 = vector.broadcast %88 : vector<1x1x32xf32> to vector<2x8x32xf32>
    %90 = arith.addf %87, %89 : vector<2x8x32xf32>
    %91 = vector.shape_cast %90 : vector<2x8x32xf32> to vector<16x32xf32>
    %92 = arith.truncf %91 : vector<16x32xf32> to vector<16x32xbf16>
    %c0_34 = arith.constant 0 : index
    %c0_35 = arith.constant 0 : index
    %93 = vector.load %arg9[%c0_34, %c0_35] : memref<32x64xbf16, #tpu.memory_space<vmem>>, vector<32x64xbf16>
    %cst_36 = arith.constant dense<0.000000e+00> : vector<16x64xf32>
    %94 = tpu.matmul %92, %93, %cst_36 {dimension_numbers = #tpu.dot_dimension_numbers<[1], [0], [0], [1], [0, 0, 1, 1], [], []>} : vector<16x32xbf16>, vector<32x64xbf16>, vector<16x64xf32> -> vector<16x64xf32>
    %c0_37 = arith.constant 0 : index
    %c0_38 = arith.constant 0 : index
    %95 = vector.load %arg10[%c0_37, %c0_38] : memref<1x64xf32, #tpu.memory_space<vmem>>, vector<1x64xf32>
    %96 = vector.broadcast %95 : vector<1x64xf32> to vector<16x64xf32>
    %97 = arith.addf %94, %96 : vector<16x64xf32>
    %cst_39 = arith.constant 5.000000e-01 : f32
    %98 = vector.broadcast %cst_39 : f32 to vector<16x64xf32>
    %99 = arith.mulf %98, %97 : vector<16x64xf32>
    %cst_40 = arith.constant 0.707106769 : f32
    %100 = vector.broadcast %cst_40 : f32 to vector<16x64xf32>
    %101 = arith.mulf %97, %100 : vector<16x64xf32>
    %cst_41 = arith.constant 0.000000e+00 : f32
    %102 = vector.broadcast %cst_41 : f32 to vector<16x64xf32>
    %103 = arith.cmpf oge, %101, %102 : vector<16x64xf32>
    %cst_42 = arith.constant 1.000000e+00 : f32
    %cst_43 = arith.constant -1.000000e+00 : f32
    %104 = vector.broadcast %cst_42 : f32 to vector<16x64xf32>
    %105 = vector.broadcast %cst_43 : f32 to vector<16x64xf32>
    %106 = arith.select %103, %104, %105 : vector<16x64xi1>, vector<16x64xf32>
    %107 = arith.mulf %101, %106 : vector<16x64xf32>
    %cst_44 = arith.constant 0.327591091 : f32
    %108 = vector.broadcast %cst_44 : f32 to vector<16x64xf32>
    %109 = arith.mulf %108, %107 : vector<16x64xf32>
    %cst_45 = arith.constant 1.000000e+00 : f32
    %110 = vector.broadcast %cst_45 : f32 to vector<16x64xf32>
    %111 = arith.addf %110, %109 : vector<16x64xf32>
    %112 = tpu.reciprocal %111 {approx = true} : vector<16x64xf32> -> vector<16x64xf32>
    %cst_46 = arith.constant 1.06140542 : f32
    %113 = vector.broadcast %cst_46 : f32 to vector<16x64xf32>
    %114 = arith.mulf %113, %112 : vector<16x64xf32>
    %cst_47 = arith.constant -1.45315206 : f32
    %115 = vector.broadcast %cst_47 : f32 to vector<16x64xf32>
    %116 = arith.addf %114, %115 : vector<16x64xf32>
    %117 = arith.mulf %116, %112 : vector<16x64xf32>
    %cst_48 = arith.constant 1.42141378 : f32
    %118 = vector.broadcast %cst_48 : f32 to vector<16x64xf32>
    %119 = arith.addf %117, %118 : vector<16x64xf32>
    %120 = arith.mulf %119, %112 : vector<16x64xf32>
    %cst_49 = arith.constant -0.284496725 : f32
    %121 = vector.broadcast %cst_49 : f32 to vector<16x64xf32>
    %122 = arith.addf %120, %121 : vector<16x64xf32>
    %123 = arith.mulf %122, %112 : vector<16x64xf32>
    %cst_50 = arith.constant 0.254829586 : f32
    %124 = vector.broadcast %cst_50 : f32 to vector<16x64xf32>
    %125 = arith.addf %123, %124 : vector<16x64xf32>
    %126 = arith.mulf %125, %112 : vector<16x64xf32>
    %cst_51 = arith.constant 0.000000e+00 : f32
    %127 = vector.broadcast %cst_51 : f32 to vector<16x64xf32>
    %128 = arith.subf %127, %107 : vector<16x64xf32>
    %129 = arith.mulf %128, %107 : vector<16x64xf32>
    %130 = math.exp %129 : vector<16x64xf32>
    %131 = arith.mulf %126, %130 : vector<16x64xf32>
    %cst_52 = arith.constant 1.000000e+00 : f32
    %132 = vector.broadcast %cst_52 : f32 to vector<16x64xf32>
    %133 = arith.subf %132, %131 : vector<16x64xf32>
    %134 = arith.mulf %106, %133 : vector<16x64xf32>
    %cst_53 = arith.constant 1.000000e+00 : f32
    %135 = vector.broadcast %cst_53 : f32 to vector<16x64xf32>
    %136 = arith.addf %135, %134 : vector<16x64xf32>
    %137 = arith.mulf %99, %136 : vector<16x64xf32>
    %138 = arith.truncf %137 : vector<16x64xf32> to vector<16x64xbf16>
    %c0_54 = arith.constant 0 : index
    %c0_55 = arith.constant 0 : index
    %139 = vector.load %arg11[%c0_54, %c0_55] : memref<64x32xbf16, #tpu.memory_space<vmem>>, vector<64x32xbf16>
    %cst_56 = arith.constant dense<0.000000e+00> : vector<16x32xf32>
    %140 = tpu.matmul %138, %139, %cst_56 {dimension_numbers = #tpu.dot_dimension_numbers<[1], [0], [0], [1], [0, 0, 1, 1], [], []>} : vector<16x64xbf16>, vector<64x32xbf16>, vector<16x32xf32> -> vector<16x32xf32>
    %c0_57 = arith.constant 0 : index
    %c0_58 = arith.constant 0 : index
    %141 = vector.load %arg12[%c0_57, %c0_58] : memref<1x32xf32, #tpu.memory_space<vmem>>, vector<1x32xf32>
    %142 = vector.broadcast %141 : vector<1x32xf32> to vector<16x32xf32>
    %143 = arith.addf %140, %142 : vector<16x32xf32>
    %144 = vector.shape_cast %143 : vector<16x32xf32> to vector<2x8x32xf32>
    %145 = arith.addf %66, %144 : vector<2x8x32xf32>
    %c0_59 = arith.constant 0 : index
    %c0_60 = arith.constant 0 : index
    %c0_61 = arith.constant 0 : index
    %146 = vector.load %arg13[%c0_59, %c0_60, %c0_61] : memref<2x8x32xf32, #tpu.memory_space<vmem>>, vector<2x8x32xf32>
    tpu.vector_store %arg13[%c0_59, %c0_60, %c0_61], %145 {strides = array<i32>} : memref<2x8x32xf32, #tpu.memory_space<vmem>>, vector<2x8x32xf32>,
    return
  }
  func.func @transform_0(%arg0: i32) -> (i32, i32, i32) {
    %c0_i32 = arith.constant 0 : i32
    %c0_i32_0 = arith.constant 0 : i32
    %c0_i32_1 = arith.constant 0 : i32
    return %arg0, %c0_i32, %c0_i32_0 : i32, i32, i32
  }
  func.func @transform_1(%arg0: i32) -> (i32, i32, i32) {
    %c0_i32 = arith.constant 0 : i32
    %c0_i32_0 = arith.constant 0 : i32
    %c0_i32_1 = arith.constant 0 : i32
    %c0_i32_2 = arith.constant 0 : i32
    return %c0_i32, %c0_i32_0, %c0_i32_1 : i32, i32, i32
  }
  func.func @transform_2(%arg0: i32) -> (i32, i32, i32) {
    %c0_i32 = arith.constant 0 : i32
    %c0_i32_0 = arith.constant 0 : i32
    %c0_i32_1 = arith.constant 0 : i32
    %c0_i32_2 = arith.constant 0 : i32
    return %c0_i32, %c0_i32_0, %c0_i32_1 : i32, i32, i32
  }
  func.func @transform_3(%arg0: i32) -> (i32, i32) {
    %c0_i32 = arith.constant 0 : i32
    %c0_i32_0 = arith.constant 0 : i32
    %c0_i32_1 = arith.constant 0 : i32
    return %c0_i32, %c0_i32_0 : i32, i32
  }
  func.func @transform_4(%arg0: i32) -> (i32, i32) {
    %c0_i32 = arith.constant 0 : i32
    %c0_i32_0 = arith.constant 0 : i32
    %c0_i32_1 = arith.constant 0 : i32
    return %c0_i32, %c0_i32_0 : i32, i32
  }
  func.func @transform_5(%arg0: i32) -> (i32, i32) {
    %c0_i32 = arith.constant 0 : i32
    %c0_i32_0 = arith.constant 0 : i32
    %c0_i32_1 = arith.constant 0 : i32
    return %c0_i32, %c0_i32_0 : i32, i32
  }
  func.func @transform_6(%arg0: i32) -> (i32, i32) {
    %c0_i32 = arith.constant 0 : i32
    %c0_i32_0 = arith.constant 0 : i32
    %c0_i32_1 = arith.constant 0 : i32
    return %c0_i32, %c0_i32_0 : i32, i32
  }
  func.func @transform_7(%arg0: i32) -> (i32, i32) {
    %c0_i32 = arith.constant 0 : i32
    %c0_i32_0 = arith.constant 0 : i32
    %c0_i32_1 = arith.constant 0 : i32
    return %c0_i32, %c0_i32_0 : i32, i32
  }
  func.func @transform_8(%arg0: i32) -> (i32, i32) {
    %c0_i32 = arith.constant 0 : i32
    %c0_i32_0 = arith.constant 0 : i32
    %c0_i32_1 = arith.constant 0 : i32
    return %c0_i32, %c0_i32_0 : i32, i32
  }
  func.func @transform_9(%arg0: i32) -> (i32, i32) {
    %c0_i32 = arith.constant 0 : i32
    %c0_i32_0 = arith.constant 0 : i32
    %c0_i32_1 = arith.constant 0 : i32
    return %c0_i32, %c0_i32_0 : i32, i32
  }
  func.func @transform_10(%arg0: i32) -> (i32, i32) {
    %c0_i32 = arith.constant 0 : i32
    %c0_i32_0 = arith.constant 0 : i32
    %c0_i32_1 = arith.constant 0 : i32
    return %c0_i32, %c0_i32_0 : i32, i32
  }
  func.func @transform_11(%arg0: i32) -> (i32, i32) {
    %c0_i32 = arith.constant 0 : i32
    %c0_i32_0 = arith.constant 0 : i32
    %c0_i32_1 = arith.constant 0 : i32
    return %c0_i32, %c0_i32_0 : i32, i32
  }
  func.func @transform_12(%arg0: i32) -> (i32, i32, i32) {
    %c0_i32 = arith.constant 0 : i32
    %c0_i32_0 = arith.constant 0 : i32
    %c0_i32_1 = arith.constant 0 : i32
    return %arg0, %c0_i32, %c0_i32_0 : i32, i32, i32
  }
}

</mosaic_0001>

<llo_original>
// kernel: tpu_custom_call.1
$region0: #{tpu_custom_call.1}
  #allocation0 [shape = 'u32[]', space=smem, size = 0x4, offset = 0x4, fixed_abs, tag = 'smem constant byte address 0x4 - core index']
  #allocation1 [shape = 'u32[72,128]{1,0:T(1,128)}', space=vmem, size = 0x9000, scoped, tag = 'internal scratch']
  %s0 = inlined_call_operand.vmem [shape: f32[4,8,32], index: 0, kind: input, shape index: {}]
  %s1 = inlined_call_operand.vmem [shape: bf16[12,32,8], index: 1, kind: input, shape index: {}]
  %s2 = inlined_call_operand.vmem [shape: bf16[4,8,32], index: 2, kind: input, shape index: {}]
  %s3 = inlined_call_operand.vmem [shape: f32[8,8], index: 3, kind: input, shape index: {}]
  %s4 = inlined_call_operand.vmem [shape: f32[1,32], index: 4, kind: input, shape index: {}]
  %s5 = inlined_call_operand.vmem [shape: f32[1,32], index: 5, kind: input, shape index: {}]
  %s6 = inlined_call_operand.vmem [shape: f32[1,32], index: 6, kind: input, shape index: {}]
  %s7 = inlined_call_operand.vmem [shape: f32[1,32], index: 7, kind: input, shape index: {}]
  %s8 = inlined_call_operand.vmem [shape: bf16[32,64], index: 8, kind: input, shape index: {}]
  %s9 = inlined_call_operand.vmem [shape: f32[1,64], index: 9, kind: input, shape index: {}]
  %s10 = inlined_call_operand.vmem [shape: bf16[64,32], index: 10, kind: input, shape index: {}]
  %s11 = inlined_call_operand.vmem [shape: f32[1,32], index: 11, kind: input, shape index: {}]
  %s12 = inlined_call_operand.hbm [shape: f32[4,8,32], index: 12, kind: output, shape index: {}]
  %s13 = sld [smem:[#allocation0]]
  $region81: #{tpu_custom_call.1} parent=0
    _
  %s15 = ssub.s32 1, %s13
  %s16 = scalar_select 0, %s15, %s13
  $region1: #{tpu_custom_call.1} parent=0
    #allocation2 [shape = 'u8[16384]{0}', space=vmem, size = 0x4000, scoped, tag = 'output window, operand 0']
    #allocation3 [shape = 's32[2]{0}', space=sflag, size = 0x8, scoped, tag = 'scoped memory for tpu_custom_call.1']
    %17 = vsyncpa [#allocation3], 0
    %s18 = scalar_lea.sflag [#allocation3], 1
    %19 = vsyncpa %s18, 0
    loop: start=0, step=1, limit=4
    $region2: #{tpu_custom_call.1} parent=1 // loop_pre_header
      _
    $region3: #{tpu_custom_call.1} parent=1 // loop_header
      %s21 = sphi 0, %s25
      %p22 = scmp.ge.s32.totalorder %s21, 4
      %s31 = sphi 0, %s33
      %s34 = sphi 0, %s31
      %s35 = sphi 0, %s34
      %s51 = sphi 0, %s35
      %s55 = sphi 0, %s55
      %s57 = sphi 0, %s55
      %s58 = sphi 0, %s57
      %s72 = sphi 0, %s58
      %s76 = sphi 0, %s76
      %s78 = sphi 0, %s76
      %s79 = sphi 0, %s78
      %s93 = sphi 0, %s79
      %s97 = sphi 0, %s97
      %s99 = sphi 0, %s97
      %s100 = sphi 0, %s99
      %s114 = sphi 0, %s100
      %s118 = sphi 0, %s118
      %s120 = sphi 0, %s118
      %s121 = sphi 0, %s120
      %s135 = sphi 0, %s121
      %s139 = sphi 0, %s139
      %s141 = sphi 0, %s139
      %s142 = sphi 0, %s141
      %s156 = sphi 0, %s142
      %s160 = sphi 0, %s160
      %s162 = sphi 0, %s160
      %s163 = sphi 0, %s162
      %s177 = sphi 0, %s163
      %s181 = sphi 0, %s181
      %s183 = sphi 0, %s181
      %s184 = sphi 0, %s183
      %s198 = sphi 0, %s184
      %s202 = sphi 0, %s202
      %s204 = sphi 0, %s202
      %s205 = sphi 0, %s204
      %s219 = sphi 0, %s205
      %s223 = sphi 0, %s223
      %s225 = sphi 0, %s223
      %s226 = sphi 0, %s225
      %s240 = sphi 0, %s226
      %s244 = sphi 0, %s244
      %s246 = sphi 0, %s244
      %s247 = sphi 0, %s246
      %s261 = sphi 0, %s247
      %s265 = sphi 0, %s265
      %s267 = sphi 0, %s265
      %s268 = sphi 0, %s267
      %s282 = sphi 0, %s268
      %s288 = sphi 0, %s290
      %s291 = sphi 0, %s288
      %s292 = sphi 0, %s291
      %s308 = sphi 0, %s292
    $region4: #{tpu_custom_call.1} parent=1 // loop_header_branch
      %24 = sbr.rel (%p22) target = $region8
    $region5: #{tpu_custom_call.1} parent=1 // loop_body
      %s26 = ssub.s32 %s21, 1
      %s27 = ssub.s32 %s21, 2
      %s28 = sadd.s32 %s21, 1
      %s29 = ssub.s32 %s21, %s28
      %p30 = scmp.eq.s32.totalorder %s29, 0
      %s32 = sadd.s32 %s31, 1
      %s33 = scalar_select %p30, %s31, %s32
      %p36 = pneg %p30
      %p37 = scmp.eq.s32.totalorder %s21, 1
      %p38 = por %p36, %p37
      %p39 = scmp.ne.s32.totalorder %s31, %s34
      %p40 = scmp.eq.s32.totalorder %s21, 0
      %p41 = por %p39, %p40
      %p42 = scmp.ne.s32.totalorder %s31, %s34
      %p43 = scmp.eq.s32.totalorder %s26, 1
      %p44 = por %p42, %p43
      %p45 = scmp.ne.s32.totalorder %s34, %s35
      %p46 = scmp.eq.s32.totalorder %s26, 0
      %p47 = por %p45, %p46
      %p48 = scmp.ne.s32.totalorder %s34, %s35
      %p49 = scmp.eq.s32.totalorder %s27, 1
      %p50 = por %p48, %p49
      %p52 = scmp.ne.s32.totalorder %s35, %s51
      %p53 = scmp.eq.s32.totalorder %s27, 0
      %p54 = por %p52, %p53
      %s56 = sadd.s32 %s55, 1
      %p59 = scmp.eq.s32.totalorder %s21, 1
      %p60 = scmp.ne.s32.totalorder %s55, %s57
      %p61 = scmp.eq.s32.totalorder %s21, 0
      %p62 = por %p60, %p61
      %p63 = scmp.ne.s32.totalorder %s55, %s57
      %p64 = scmp.eq.s32.totalorder %s26, 1
      %p65 = por %p63, %p64
      %p66 = scmp.ne.s32.totalorder %s57, %s58
      %p67 = scmp.eq.s32.totalorder %s26, 0
      %p68 = por %p66, %p67
      %p69 = scmp.ne.s32.totalorder %s57, %s58
      %p70 = scmp.eq.s32.totalorder %s27, 1
      %p71 = por %p69, %p70
      %p73 = scmp.ne.s32.totalorder %s58, %s72
      %p74 = scmp.eq.s32.totalorder %s27, 0
      %p75 = por %p73, %p74
      %s77 = sadd.s32 %s76, 1
      %p80 = scmp.eq.s32.totalorder %s21, 1
      %p81 = scmp.ne.s32.totalorder %s76, %s78
      %p82 = scmp.eq.s32.totalorder %s21, 0
      %p83 = por %p81, %p82
      %p84 = scmp.ne.s32.totalorder %s76, %s78
      %p85 = scmp.eq.s32.totalorder %s26, 1
      %p86 = por %p84, %p85
      %p87 = scmp.ne.s32.totalorder %s78, %s79
      %p88 = scmp.eq.s32.totalorder %s26, 0
      %p89 = por %p87, %p88
      %p90 = scmp.ne.s32.totalorder %s78, %s79
      %p91 = scmp.eq.s32.totalorder %s27, 1
      %p92 = por %p90, %p91
      %p94 = scmp.ne.s32.totalorder %s79, %s93
      %p95 = scmp.eq.s32.totalorder %s27, 0
      %p96 = por %p94, %p95
      %s98 = sadd.s32 %s97, 1
      %p101 = scmp.eq.s32.totalorder %s21, 1
      %p102 = scmp.ne.s32.totalorder %s97, %s99
      %p103 = scmp.eq.s32.totalorder %s21, 0
      %p104 = por %p102, %p103
      %p105 = scmp.ne.s32.totalorder %s97, %s99
      %p106 = scmp.eq.s32.totalorder %s26, 1
      %p107 = por %p105, %p106
      %p108 = scmp.ne.s32.totalorder %s99, %s100
      %p109 = scmp.eq.s32.totalorder %s26, 0
      %p110 = por %p108, %p109
      %p111 = scmp.ne.s32.totalorder %s99, %s100
      %p112 = scmp.eq.s32.totalorder %s27, 1
      %p113 = por %p111, %p112
      %p115 = scmp.ne.s32.totalorder %s100, %s114
      %p116 = scmp.eq.s32.totalorder %s27, 0
      %p117 = por %p115, %p116
      %s119 = sadd.s32 %s118, 1
      %p122 = scmp.eq.s32.totalorder %s21, 1
      %p123 = scmp.ne.s32.totalorder %s118, %s120
      %p124 = scmp.eq.s32.totalorder %s21, 0
      %p125 = por %p123, %p124
      %p126 = scmp.ne.s32.totalorder %s118, %s120
      %p127 = scmp.eq.s32.totalorder %s26, 1
      %p128 = por %p126, %p127
      %p129 = scmp.ne.s32.totalorder %s120, %s121
      %p130 = scmp.eq.s32.totalorder %s26, 0
      %p131 = por %p129, %p130
      %p132 = scmp.ne.s32.totalorder %s120, %s121
      %p133 = scmp.eq.s32.totalorder %s27, 1
      %p134 = por %p132, %p133
      %p136 = scmp.ne.s32.totalorder %s121, %s135
      %p137 = scmp.eq.s32.totalorder %s27, 0
      %p138 = por %p136, %p137
      %s140 = sadd.s32 %s139, 1
      %p143 = scmp.eq.s32.totalorder %s21, 1
      %p144 = scmp.ne.s32.totalorder %s139, %s141
      %p145 = scmp.eq.s32.totalorder %s21, 0
      %p146 = por %p144, %p145
      %p147 = scmp.ne.s32.totalorder %s139, %s141
      %p148 = scmp.eq.s32.totalorder %s26, 1
      %p149 = por %p147, %p148
      %p150 = scmp.ne.s32.totalorder %s141, %s142
      %p151 = scmp.eq.s32.totalorder %s26, 0
      %p152 = por %p150, %p151
      %p153 = scmp.ne.s32.totalorder %s141, %s142
      %p154 = scmp.eq.s32.totalorder %s27, 1
      %p155 = por %p153, %p154
      %p157 = scmp.ne.s32.totalorder %s142, %s156
      %p158 = scmp.eq.s32.totalorder %s27, 0
      %p159 = por %p157, %p158
      %s161 = sadd.s32 %s160, 1
      %p164 = scmp.eq.s32.totalorder %s21, 1
      %p165 = scmp.ne.s32.totalorder %s160, %s162
      %p166 = scmp.eq.s32.totalorder %s21, 0
      %p167 = por %p165, %p166
      %p168 = scmp.ne.s32.totalorder %s160, %s162
      %p169 = scmp.eq.s32.totalorder %s26, 1
      %p170 = por %p168, %p169
      %p171 = scmp.ne.s32.totalorder %s162, %s163
      %p172 = scmp.eq.s32.totalorder %s26, 0
      %p173 = por %p171, %p172
      %p174 = scmp.ne.s32.totalorder %s162, %s163
      %p175 = scmp.eq.s32.totalorder %s27, 1
      %p176 = por %p174, %p175
      %p178 = scmp.ne.s32.totalorder %s163, %s177
      %p179 = scmp.eq.s32.totalorder %s27, 0
      %p180 = por %p178, %p179
      %s182 = sadd.s32 %s181, 1
      %p185 = scmp.eq.s32.totalorder %s21, 1
      %p186 = scmp.ne.s32.totalorder %s181, %s183
      %p187 = scmp.eq.s32.totalorder %s21, 0
      %p188 = por %p186, %p187
      %p189 = scmp.ne.s32.totalorder %s181, %s183
      %p190 = scmp.eq.s32.totalorder %s26, 1
      %p191 = por %p189, %p190
      %p192 = scmp.ne.s32.totalorder %s183, %s184
      %p193 = scmp.eq.s32.totalorder %s26, 0
      %p194 = por %p192, %p193
      %p195 = scmp.ne.s32.totalorder %s183, %s184
      %p196 = scmp.eq.s32.totalorder %s27, 1
      %p197 = por %p195, %p196
      %p199 = scmp.ne.s32.totalorder %s184, %s198
      %p200 = scmp.eq.s32.totalorder %s27, 0
      %p201 = por %p199, %p200
      %s203 = sadd.s32 %s202, 1
      %p206 = scmp.eq.s32.totalorder %s21, 1
      %p207 = scmp.ne.s32.totalorder %s202, %s204
      %p208 = scmp.eq.s32.totalorder %s21, 0
      %p209 = por %p207, %p208
      %p210 = scmp.ne.s32.totalorder %s202, %s204
      %p211 = scmp.eq.s32.totalorder %s26, 1
      %p212 = por %p210, %p211
      %p213 = scmp.ne.s32.totalorder %s204, %s205
      %p214 = scmp.eq.s32.totalorder %s26, 0
      %p215 = por %p213, %p214
      %p216 = scmp.ne.s32.totalorder %s204, %s205
      %p217 = scmp.eq.s32.totalorder %s27, 1
      %p218 = por %p216, %p217
      %p220 = scmp.ne.s32.totalorder %s205, %s219
      %p221 = scmp.eq.s32.totalorder %s27, 0
      %p222 = por %p220, %p221
      %s224 = sadd.s32 %s223, 1
      %p227 = scmp.eq.s32.totalorder %s21, 1
      %p228 = scmp.ne.s32.totalorder %s223, %s225
      %p229 = scmp.eq.s32.totalorder %s21, 0
      %p230 = por %p228, %p229
      %p231 = scmp.ne.s32.totalorder %s223, %s225
      %p232 = scmp.eq.s32.totalorder %s26, 1
      %p233 = por %p231, %p232
      %p234 = scmp.ne.s32.totalorder %s225, %s226
      %p235 = scmp.eq.s32.totalorder %s26, 0
      %p236 = por %p234, %p235
      %p237 = scmp.ne.s32.totalorder %s225, %s226
      %p238 = scmp.eq.s32.totalorder %s27, 1
      %p239 = por %p237, %p238
      %p241 = scmp.ne.s32.totalorder %s226, %s240
      %p242 = scmp.eq.s32.totalorder %s27, 0
      %p243 = por %p241, %p242
      %s245 = sadd.s32 %s244, 1
      %p248 = scmp.eq.s32.totalorder %s21, 1
      %p249 = scmp.ne.s32.totalorder %s244, %s246
      %p250 = scmp.eq.s32.totalorder %s21, 0
      %p251 = por %p249, %p250
      %p252 = scmp.ne.s32.totalorder %s244, %s246
      %p253 = scmp.eq.s32.totalorder %s26, 1
      %p254 = por %p252, %p253
      %p255 = scmp.ne.s32.totalorder %s246, %s247
      %p256 = scmp.eq.s32.totalorder %s26, 0
      %p257 = por %p255, %p256
      %p258 = scmp.ne.s32.totalorder %s246, %s247
      %p259 = scmp.eq.s32.totalorder %s27, 1
      %p260 = por %p258, %p259
      %p262 = scmp.ne.s32.totalorder %s247, %s261
      %p263 = scmp.eq.s32.totalorder %s27, 0
      %p264 = por %p262, %p263
      %s266 = sadd.s32 %s265, 1
      %p269 = scmp.eq.s32.totalorder %s21, 1
      %p270 = scmp.ne.s32.totalorder %s265, %s267
      %p271 = scmp.eq.s32.totalorder %s21, 0
      %p272 = por %p270, %p271
      %p273 = scmp.ne.s32.totalorder %s265, %s267
      %p274 = scmp.eq.s32.totalorder %s26, 1
      %p275 = por %p273, %p274
      %p276 = scmp.ne.s32.totalorder %s267, %s268
      %p277 = scmp.eq.s32.totalorder %s26, 0
      %p278 = por %p276, %p277
      %p279 = scmp.ne.s32.totalorder %s267, %s268
      %p280 = scmp.eq.s32.totalorder %s27, 1
      %p281 = por %p279, %p280
      %p283 = scmp.ne.s32.totalorder %s268, %s282
      %p284 = scmp.eq.s32.totalorder %s27, 0
      %p285 = por %p283, %p284
      %s286 = ssub.s32 %s21, %s28
      %p287 = scmp.eq.s32.totalorder %s286, 0
      %s289 = sadd.s32 %s288, 1
      %s290 = scalar_select %p287, %s288, %s289
      %p293 = pneg %p287
      %p294 = scmp.eq.s32.totalorder %s21, 1
      %p295 = por %p293, %p294
      %p296 = scmp.ne.s32.totalorder %s288, %s291
      %p297 = scmp.eq.s32.totalorder %s21, 0
      %p298 = por %p296, %p297
      %p299 = scmp.ne.s32.totalorder %s288, %s291
      %p300 = scmp.eq.s32.totalorder %s26, 1
      %p301 = por %p299, %p300
      %p302 = scmp.ne.s32.totalorder %s291, %s292
      %p303 = scmp.eq.s32.totalorder %s26, 0
      %p304 = por %p302, %p303
      %p305 = scmp.ne.s32.totalorder %s291, %s292
      %p306 = scmp.eq.s32.totalorder %s27, 1
      %p307 = por %p305, %p306
      %p309 = scmp.ne.s32.totalorder %s292, %s308
      %p310 = scmp.eq.s32.totalorder %s27, 0
      %p311 = por %p309, %p310
      %p312 = scmp.le.s32.totalorder 1, %s21
      %p313 = scmp.lt.s32.totalorder %s21, 3
      %p314 = pnand %p312, %p313
      %p315 = pneg %p314
      // Predicated region
      $region9: #{tpu_custom_call.1} parent=5 // pred_check
        _
      $region10: #{tpu_custom_call.1} parent=5 // pred_check_branch
        %317 = sbr.rel (%p314) target = $region12
      $region11: #{tpu_custom_call.1} parent=5 // pred_region
        %s318 = ssub.s32 %s21, 1
        // Predicated region
        $region13: #{tpu_custom_call.1} parent=11 // pred_check
          %p319 = pneg %p68
        $region14: #{tpu_custom_call.1} parent=11 // pred_check_branch
          %321 = sbr.rel (%p319) target = $region16
        $region15: #{tpu_custom_call.1} parent=11 // pred_region
          _
        $region16: #{tpu_custom_call.1} parent=11 // pred_fallthru
          _
        // Predicated region
        $region17: #{tpu_custom_call.1} parent=11 // pred_check
          %p322 = pneg %p89
        $region18: #{tpu_custom_call.1} parent=11 // pred_check_branch
          %324 = sbr.rel (%p322) target = $region20
        $region19: #{tpu_custom_call.1} parent=11 // pred_region
          _
        $region20: #{tpu_custom_call.1} parent=11 // pred_fallthru
          _
        // Predicated region
        $region21: #{tpu_custom_call.1} parent=11 // pred_check
          %p325 = pneg %p110
        $region22: #{tpu_custom_call.1} parent=11 // pred_check_branch
          %327 = sbr.rel (%p325) target = $region24
        $region23: #{tpu_custom_call.1} parent=11 // pred_region
          _
        $region24: #{tpu_custom_call.1} parent=11 // pred_fallthru
          _
        // Predicated region
        $region25: #{tpu_custom_call.1} parent=11 // pred_check
          %p328 = pneg %p131
        $region26: #{tpu_custom_call.1} parent=11 // pred_check_branch
          %330 = sbr.rel (%p328) target = $region28
        $region27: #{tpu_custom_call.1} parent=11 // pred_region
          _
        $region28: #{tpu_custom_call.1} parent=11 // pred_fallthru
          _
        // Predicated region
        $region29: #{tpu_custom_call.1} parent=11 // pred_check
          %p331 = pneg %p152
        $region30: #{tpu_custom_call.1} parent=11 // pred_check_branch
          %333 = sbr.rel (%p331) target = $region32
        $region31: #{tpu_custom_call.1} parent=11 // pred_region
          _
        $region32: #{tpu_custom_call.1} parent=11 // pred_fallthru
          _
        // Predicated region
        $region33: #{tpu_custom_call.1} parent=11 // pred_check
          %p334 = pneg %p173
        $region34: #{tpu_custom_call.1} parent=11 // pred_check_branch
          %336 = sbr.rel (%p334) target = $region36
        $region35: #{tpu_custom_call.1} parent=11 // pred_region
          _
        $region36: #{tpu_custom_call.1} parent=11 // pred_fallthru
          _
        // Predicated region
        $region37: #{tpu_custom_call.1} parent=11 // pred_check
          %p337 = pneg %p194
        $region38: #{tpu_custom_call.1} parent=11 // pred_check_branch
          %339 = sbr.rel (%p337) target = $region40
        $region39: #{tpu_custom_call.1} parent=11 // pred_region
          _
        $region40: #{tpu_custom_call.1} parent=11 // pred_fallthru
          _
        // Predicated region
        $region41: #{tpu_custom_call.1} parent=11 // pred_check
          %p340 = pneg %p215
        $region42: #{tpu_custom_call.1} parent=11 // pred_check_branch
          %342 = sbr.rel (%p340) target = $region44
        $region43: #{tpu_custom_call.1} parent=11 // pred_region
          _
        $region44: #{tpu_custom_call.1} parent=11 // pred_fallthru
          _
        // Predicated region
        $region45: #{tpu_custom_call.1} parent=11 // pred_check
          %p343 = pneg %p236
        $region46: #{tpu_custom_call.1} parent=11 // pred_check_branch
          %345 = sbr.rel (%p343) target = $region48
        $region47: #{tpu_custom_call.1} parent=11 // pred_region
          _
        $region48: #{tpu_custom_call.1} parent=11 // pred_fallthru
          _
        // Predicated region
        $region49: #{tpu_custom_call.1} parent=11 // pred_check
          %p346 = pneg %p257
        $region50: #{tpu_custom_call.1} parent=11 // pred_check_branch
          %348 = sbr.rel (%p346) target = $region52
        $region51: #{tpu_custom_call.1} parent=11 // pred_region
          _
        $region52: #{tpu_custom_call.1} parent=11 // pred_fallthru
          _
        // Predicated region
        $region53: #{tpu_custom_call.1} parent=11 // pred_check
          %p349 = pneg %p278
        $region54: #{tpu_custom_call.1} parent=11 // pred_check_branch
          %351 = sbr.rel (%p349) target = $region56
        $region55: #{tpu_custom_call.1} parent=11 // pred_region
          _
        $region56: #{tpu_custom_call.1} parent=11 // pred_fallthru
          _
      $region12: #{tpu_custom_call.1} parent=5 // pred_fallthru
        _
      %p352 = scmp.lt.s32.totalorder %s21, 2
      // Predicated region
      $region57: #{tpu_custom_call.1} parent=5 // pred_check
        %p353 = pneg %p352
      $region58: #{tpu_custom_call.1} parent=5 // pred_check_branch
        %355 = sbr.rel (%p353) target = $region60
      $region59: #{tpu_custom_call.1} parent=5 // pred_region
        // Predicated region
        $region61: #{tpu_custom_call.1} parent=59 // pred_check
          %p356 = pneg %p41
        $region62: #{tpu_custom_call.1} parent=59 // pred_check_branch
          %358 = sbr.rel (%p356) target = $region64
        $region63: #{tpu_custom_call.1} parent=59 // pred_region
          %s359 = smul.u32 2, %s21
          %p360 = scmp.lt.s32.totalorder %s359, 3
          %s361 = scalar_select %p360, %s359, 3
          %s362 = smul.addr %s361, 8
          %s363 = scalar_lea.vmem %s0, %s362
          %s364 = smul.u32 2, %s21
        $region64: #{tpu_custom_call.1} parent=59 // pred_fallthru
          _
      $region60: #{tpu_custom_call.1} parent=5 // pred_fallthru
        _
      %p365 = scmp.le.s32.totalorder 1, %s21
      %p366 = scmp.lt.s32.totalorder %s21, 3
      %p367 = pnand %p365, %p366
      %p368 = pneg %p367
      // Predicated region
      $region65: #{tpu_custom_call.1} parent=5 // pred_check
        _
      $region66: #{tpu_custom_call.1} parent=5 // pred_check_branch
        %370 = sbr.rel (%p367) target = $region68
      $region67: #{tpu_custom_call.1} parent=5 // pred_region
        %s371 = ssub.s32 %s21, 1
        %s372 = smul.u32 2, %s26
        %p373 = scmp.lt.s32.totalorder %s372, 3
        %s374 = scalar_select %p373, %s372, 3
        %s375 = smul.addr %s374, 8
        %s376 = scalar_lea.vmem %s0, %s375
        %p377 = pneg %p47
        %p378 = pneg %p44
        %p379 = pneg %p68
        %p380 = pneg %p65
        %p381 = pneg %p89
        %p382 = pneg %p86
        %p383 = pneg %p110
        %p384 = pneg %p107
        %p385 = pneg %p131
        %p386 = pneg %p128
        %p387 = pneg %p152
        %p388 = pneg %p149
        %p389 = pneg %p173
        %p390 = pneg %p170
        %p391 = pneg %p194
        %p392 = pneg %p191
        %p393 = pneg %p215
        %p394 = pneg %p212
        %p395 = pneg %p236
        %p396 = pneg %p233
        %p397 = pneg %p257
        %p398 = pneg %p254
        %p399 = pneg %p278
        %p400 = pneg %p275
        %p401 = pneg %p304
        %p402 = pneg %p301
        %s403 = sand.u32 %s291, 1
        %s404 = scalar_lea.sflag [#allocation3], %s403
        %s405 = sand.u32 %s291, 1
        %s406 = smul.addr %s405, 16
        %s407 = scalar_lea.vmem [#allocation2], %s406
        %s408 = smul.u32 2, %s26
        %p409 = scmp.lt.s32.totalorder %s408, 3
        %s410 = scalar_select %p409, %s408, 3
        %s411 = smul.addr %s410, 8
        %s412 = scalar_lea.vmem %s0, %s411
        %s413 = smul.u32 2, %s26
        %s414 = smul.u32 2, %s26
        %v416 = vld [vmem:[%s412] sm:$0xff]
        %v417 = vld [vmem:[%s412 + $0x8] sm:$0xff]
        %v418 = vld [vmem:[%s4] sm:$0x1]
        %v419 = vld [vmem:[%s5] sm:$0x1]
        %vm420 = vcmask 261120
        %v421 = vsel %vm420, %v416, 0.0
        %422 = vadd.xlane.f32.xlu0 %v421
        %v423 = vpop.xlane.xlu0 %422
        %v424 = vsel %vm420, %v417, 0.0
        %425 = vadd.xlane.f32.xlu0 %v424
        %v426 = vpop.xlane.xlu0 %425
        %v427 = vrcp.pop 32.0
        %v428 = vmul.f32 32.0, %v427
        %v429 = vsub.f32 1.0, %v428
        %v430 = vmul.f32 %v427, %v429
        %v431 = vadd.f32 %v427, %v430
        %vm432 = vweird.f32 %v427
        %v433 = vsel %vm432, %v427, %v431
        %v434 = vmul.f32 %v423, %v433
        %v435 = vmul.f32 %v426, %v433
        %v436 = vsub.f32 %v416, %v434
        %v437 = vsub.f32 %v417, %v435
        %v438 = vmul.f32 %v436, %v436
        %v439 = vmul.f32 %v437, %v437
        %v440 = vsel %vm420, %v438, 0.0
        %441 = vadd.xlane.f32.xlu0 %v440
        %v442 = vpop.xlane.xlu0 %441
        %v443 = vsel %vm420, %v439, 0.0
        %444 = vadd.xlane.f32.xlu0 %v443
        %v445 = vpop.xlane.xlu0 %444
        %v446 = vmul.f32 %v442, %v433
        %v447 = vmul.f32 %v445, %v433
        %v448 = vadd.f32 %v446, 1e-12
        %v449 = vadd.f32 %v447, 1e-12
        %v450 = vrsqrt.pop %v448
        %v451 = vmul.f32 %v450, %v448
        %v452 = vmul.f32 %v451, %v450
        %v453 = vmul.f32 0.5, %v452
        %v454 = vsub.f32 1.5, %v453
        %v455 = vmul.f32 %v450, %v454
        %vm456 = vweird.f32 %v448
        %vm457 = vweird.f32 %v450
        %vm458 = vmor %vm456, %vm457
        %v459 = vsel %vm458, %v450, %v455
        %v460 = vrsqrt.pop %v449
        %v461 = vmul.f32 %v460, %v449
        %v462 = vmul.f32 %v461, %v460
        %v463 = vmul.f32 0.5, %v462
        %v464 = vsub.f32 1.5, %v463
        %v465 = vmul.f32 %v460, %v464
        %vm466 = vweird.f32 %v449
        %vm467 = vweird.f32 %v460
        %vm468 = vmor %vm466, %vm467
        %v469 = vsel %vm468, %v460, %v465
        %v470 = vmul.f32 %v436, %v459
        %v471 = vmul.f32 %v437, %v469
        %v473 = vperm.slane %v418, 0
        %v475 = vmul.f32 %v470, %v473
        %v476 = vmul.f32 %v471, %v473
        %v478 = vperm.slane %v419, 0
        %v480 = vadd.f32 %v475, %v478
        %v481 = vadd.f32 %v476, %v478
        %v482 = vpack.c.bf16 %v480, %v480
        %v483 = vpack.c.bf16 %v481, %v481
        %v484 = vld [vmem:[%s1] sm:$0xf]
        %v485 = vld [vmem:[%s1 + $0x4] sm:$0xf]
        %v486 = vld [vmem:[%s1 + $0x8] sm:$0xf]
        %v487 = vld [vmem:[%s1 + $0xc] sm:$0xf]
        %v488 = vld [vmem:[%s1 + $0x10] sm:$0xf]
        %v489 = vld [vmem:[%s1 + $0x14] sm:$0xf]
        %v490 = vld [vmem:[%s1 + $0x18] sm:$0xf]
        %v491 = vld [vmem:[%s1 + $0x1c] sm:$0xf]
        %v492 = vld [vmem:[%s1 + $0x20] sm:$0xf]
        %v493 = vld [vmem:[%s1 + $0x24] sm:$0xf]
        %v494 = vld [vmem:[%s1 + $0x28] sm:$0xf]
        %v495 = vld [vmem:[%s1 + $0x2c] sm:$0xf]
        %v496 = vld [vmem:[%s1 + $0x30] sm:$0xf]
        %v497 = vld [vmem:[%s1 + $0x34] sm:$0xf]
        %v498 = vld [vmem:[%s1 + $0x38] sm:$0xf]
        %v499 = vld [vmem:[%s1 + $0x3c] sm:$0xf]
        %v500 = vld [vmem:[%s1 + $0x40] sm:$0xf]
        %v501 = vld [vmem:[%s1 + $0x44] sm:$0xf]
        %v502 = vld [vmem:[%s1 + $0x48] sm:$0xf]
        %v503 = vld [vmem:[%s1 + $0x4c] sm:$0xf]
        %v504 = vld [vmem:[%s1 + $0x50] sm:$0xf]
        %v505 = vld [vmem:[%s1 + $0x54] sm:$0xf]
        %v506 = vld [vmem:[%s1 + $0x58] sm:$0xf]
        %v507 = vld [vmem:[%s1 + $0x5c] sm:$0xf]
        %v508 = vld [vmem:[%s1 + $0x60] sm:$0xf]
        %v509 = vld [vmem:[%s1 + $0x64] sm:$0xf]
        %v510 = vld [vmem:[%s1 + $0x68] sm:$0xf]
        %v511 = vld [vmem:[%s1 + $0x6c] sm:$0xf]
        %v512 = vld [vmem:[%s1 + $0x70] sm:$0xf]
        %v513 = vld [vmem:[%s1 + $0x74] sm:$0xf]
        %v514 = vld [vmem:[%s1 + $0x78] sm:$0xf]
        %v515 = vld [vmem:[%s1 + $0x7c] sm:$0xf]
        %v516 = vld [vmem:[%s1 + $0x80] sm:$0xf]
        %v517 = vld [vmem:[%s1 + $0x84] sm:$0xf]
        %v518 = vld [vmem:[%s1 + $0x88] sm:$0xf]
        %v519 = vld [vmem:[%s1 + $0x8c] sm:$0xf]
        %v520 = vld [vmem:[%s1 + $0x90] sm:$0xf]
        %v521 = vld [vmem:[%s1 + $0x94] sm:$0xf]
        %v522 = vld [vmem:[%s1 + $0x98] sm:$0xf]
        %v523 = vld [vmem:[%s1 + $0x9c] sm:$0xf]
        %v524 = vld [vmem:[%s1 + $0xa0] sm:$0xf]
        %v525 = vld [vmem:[%s1 + $0xa4] sm:$0xf]
        %v526 = vld [vmem:[%s1 + $0xa8] sm:$0xf]
        %v527 = vld [vmem:[%s1 + $0xac] sm:$0xf]
        %v528 = vld [vmem:[%s1 + $0xb0] sm:$0xf]
        %v529 = vld [vmem:[%s1 + $0xb4] sm:$0xf]
        %v530 = vld [vmem:[%s1 + $0xb8] sm:$0xf]
        %v531 = vld [vmem:[%s1 + $0xbc] sm:$0xf]
        %v536 = vunpack.c.l.b16 %v484
        %v537 = vunpack.c.l.b16 %v485
        %v538 = vunpack.c.l.b16 %v486
        %v539 = vunpack.c.l.b16 %v487
        %v540 = vpack.c.b16 %v537, %v536
        %v541 = vpack.c.b16 %v539, %v538
        %v545 = vsel %vm420, %v482, 0
        %547 = vmatpush.bf16.msra.mxu0 0
        %548 = vmatpush.bf16.msra.mxu0 0
        %549 = vmatpush.bf16.msra.mxu0 0
        %550 = vmatpush.bf16.msra.mxu0 0
        %551 = vmatpush.bf16.msra.mxu0 0
        %552 = vmatpush.bf16.msra.mxu0 0
        %553 = vmatpush.bf16.msra.mxu0 %v541
        %554 = vmatpush.bf16.msra.mxu0 %v540
        %555 = vmatmul.bf16.gmra.mxu0 %v545
        %v556 = vpop.f32.mrf.mxu0
        %v557 = vadd.f32 0.0, %v556
        %v558 = vpop.f32.mrf.mxu0
        %559 = vdwg.mxu0
        %v561 = vsel %vm420, %v483, 0
        %563 = vmatpush.bf16.msra.mxu0 0
        %564 = vmatpush.bf16.msra.mxu0 0
        %565 = vmatpush.bf16.msra.mxu0 0
        %566 = vmatpush.bf16.msra.mxu0 0
        %567 = vmatpush.bf16.msra.mxu0 0
        %568 = vmatpush.bf16.msra.mxu0 0
        %569 = vmatpush.bf16.msra.mxu0 %v541
        %570 = vmatpush.bf16.msra.mxu0 %v540
        %571 = vmatmul.bf16.gmra.mxu0 %v561
        %v572 = vpop.f32.mrf.mxu0
        %v573 = vadd.f32 0.0, %v572
        %v574 = vpop.f32.mrf.mxu0
        %575 = vdwg.mxu0
        %v580 = vunpack.c.l.b16 %v488
        %v581 = vunpack.c.l.b16 %v489
        %v582 = vunpack.c.l.b16 %v490
        %v583 = vunpack.c.l.b16 %v491
        %v584 = vpack.c.b16 %v581, %v580
        %v585 = vpack.c.b16 %v583, %v582
        %588 = vmatpush.bf16.msra.mxu0 0
        %589 = vmatpush.bf16.msra.mxu0 0
        %590 = vmatpush.bf16.msra.mxu0 0
        %591 = vmatpush.bf16.msra.mxu0 0
        %592 = vmatpush.bf16.msra.mxu0 0
        %593 = vmatpush.bf16.msra.mxu0 0
        %594 = vmatpush.bf16.msra.mxu0 %v585
        %595 = vmatpush.bf16.msra.mxu0 %v584
        %596 = vmatmul.bf16.gmra.mxu0 %v545
        %v597 = vpop.f32.mrf.mxu0
        %v598 = vadd.f32 0.0, %v597
        %v599 = vpop.f32.mrf.mxu0
        %600 = vdwg.mxu0
        %601 = vmatpush.bf16.msra.mxu0 0
        %602 = vmatpush.bf16.msra.mxu0 0
        %603 = vmatpush.bf16.msra.mxu0 0
        %604 = vmatpush.bf16.msra.mxu0 0
        %605 = vmatpush.bf16.msra.mxu0 0
        %606 = vmatpush.bf16.msra.mxu0 0
        %607 = vmatpush.bf16.msra.mxu0 %v585
        %608 = vmatpush.bf16.msra.mxu0 %v584
        %609 = vmatmul.bf16.gmra.mxu0 %v561
        %v610 = vpop.f32.mrf.mxu0
        %v611 = vadd.f32 0.0, %v610
        %v612 = vpop.f32.mrf.mxu0
        %613 = vdwg.mxu0
        %v618 = vunpack.c.l.b16 %v492
        %v619 = vunpack.c.l.b16 %v493
        %v620 = vunpack.c.l.b16 %v494
        %v621 = vunpack.c.l.b16 %v495
        %v622 = vpack.c.b16 %v619, %v618
        %v623 = vpack.c.b16 %v621, %v620
        %626 = vmatpush.bf16.msra.mxu0 0
        %627 = vmatpush.bf16.msra.mxu0 0
        %628 = vmatpush.bf16.msra.mxu0 0
        %629 = vmatpush.bf16.msra.mxu0 0
        %630 = vmatpush.bf16.msra.mxu0 0
        %631 = vmatpush.bf16.msra.mxu0 0
        %632 = vmatpush.bf16.msra.mxu0 %v623
        %633 = vmatpush.bf16.msra.mxu0 %v622
        %634 = vmatmul.bf16.gmra.mxu0 %v545
        %v635 = vpop.f32.mrf.mxu0
        %v636 = vadd.f32 0.0, %v635
        %v637 = vpop.f32.mrf.mxu0
        %638 = vdwg.mxu0
        %639 = vmatpush.bf16.msra.mxu0 0
        %640 = vmatpush.bf16.msra.mxu0 0
        %641 = vmatpush.bf16.msra.mxu0 0
        %642 = vmatpush.bf16.msra.mxu0 0
        %643 = vmatpush.bf16.msra.mxu0 0
        %644 = vmatpush.bf16.msra.mxu0 0
        %645 = vmatpush.bf16.msra.mxu0 %v623
        %646 = vmatpush.bf16.msra.mxu0 %v622
        %647 = vmatmul.bf16.gmra.mxu0 %v561
        %v648 = vpop.f32.mrf.mxu0
        %v649 = vadd.f32 0.0, %v648
        %v650 = vpop.f32.mrf.mxu0
        %651 = vdwg.mxu0
        %v656 = vunpack.c.l.b16 %v496
        %v657 = vunpack.c.l.b16 %v497
        %v658 = vunpack.c.l.b16 %v498
        %v659 = vunpack.c.l.b16 %v499
        %v660 = vpack.c.b16 %v657, %v656
        %v661 = vpack.c.b16 %v659, %v658
        %664 = vmatpush.bf16.msra.mxu0 0
        %665 = vmatpush.bf16.msra.mxu0 0
        %666 = vmatpush.bf16.msra.mxu0 0
        %667 = vmatpush.bf16.msra.mxu0 0
        %668 = vmatpush.bf16.msra.mxu0 0
        %669 = vmatpush.bf16.msra.mxu0 0
        %670 = vmatpush.bf16.msra.mxu0 %v661
        %671 = vmatpush.bf16.msra.mxu0 %v660
        %672 = vmatmul.bf16.gmra.mxu0 %v545
        %v673 = vpop.f32.mrf.mxu0
        %v674 = vadd.f32 0.0, %v673
        %v675 = vpop.f32.mrf.mxu0
        %676 = vdwg.mxu0
        %677 = vmatpush.bf16.msra.mxu0 0
        %678 = vmatpush.bf16.msra.mxu0 0
        %679 = vmatpush.bf16.msra.mxu0 0
        %680 = vmatpush.bf16.msra.mxu0 0
        %681 = vmatpush.bf16.msra.mxu0 0
        %682 = vmatpush.bf16.msra.mxu0 0
        %683 = vmatpush.bf16.msra.mxu0 %v661
        %684 = vmatpush.bf16.msra.mxu0 %v660
        %685 = vmatmul.bf16.gmra.mxu0 %v561
        %v686 = vpop.f32.mrf.mxu0
        %v687 = vadd.f32 0.0, %v686
        %v688 = vpop.f32.mrf.mxu0
        %689 = vdwg.mxu0
        %v694 = vunpack.c.l.b16 %v500
        %v695 = vunpack.c.l.b16 %v501
        %v696 = vunpack.c.l.b16 %v502
        %v697 = vunpack.c.l.b16 %v503
        %v698 = vpack.c.b16 %v695, %v694
        %v699 = vpack.c.b16 %v697, %v696
        %702 = vmatpush.bf16.msra.mxu0 0
        %703 = vmatpush.bf16.msra.mxu0 0
        %704 = vmatpush.bf16.msra.mxu0 0
        %705 = vmatpush.bf16.msra.mxu0 0
        %706 = vmatpush.bf16.msra.mxu0 0
        %707 = vmatpush.bf16.msra.mxu0 0
        %708 = vmatpush.bf16.msra.mxu0 %v699
        %709 = vmatpush.bf16.msra.mxu0 %v698
        %710 = vmatmul.bf16.gmra.mxu0 %v545
        %v711 = vpop.f32.mrf.mxu0
        %v712 = vadd.f32 0.0, %v711
        %v713 = vpop.f32.mrf.mxu0
        %714 = vdwg.mxu0
        %715 = vmatpush.bf16.msra.mxu0 0
        %716 = vmatpush.bf16.msra.mxu0 0
        %717 = vmatpush.bf16.msra.mxu0 0
        %718 = vmatpush.bf16.msra.mxu0 0
        %719 = vmatpush.bf16.msra.mxu0 0
        %720 = vmatpush.bf16.msra.mxu0 0
        %721 = vmatpush.bf16.msra.mxu0 %v699
        %722 = vmatpush.bf16.msra.mxu0 %v698
        %723 = vmatmul.bf16.gmra.mxu0 %v561
        %v724 = vpop.f32.mrf.mxu0
        %v725 = vadd.f32 0.0, %v724
        %v726 = vpop.f32.mrf.mxu0
        %727 = vdwg.mxu0
        %v732 = vunpack.c.l.b16 %v504
        %v733 = vunpack.c.l.b16 %v505
        %v734 = vunpack.c.l.b16 %v506
        %v735 = vunpack.c.l.b16 %v507
        %v736 = vpack.c.b16 %v733, %v732
        %v737 = vpack.c.b16 %v735, %v734
        %740 = vmatpush.bf16.msra.mxu0 0
        %741 = vmatpush.bf16.msra.mxu0 0
        %742 = vmatpush.bf16.msra.mxu0 0
        %743 = vmatpush.bf16.msra.mxu0 0
        %744 = vmatpush.bf16.msra.mxu0 0
        %745 = vmatpush.bf16.msra.mxu0 0
        %746 = vmatpush.bf16.msra.mxu0 %v737
        %747 = vmatpush.bf16.msra.mxu0 %v736
        %748 = vmatmul.bf16.gmra.mxu0 %v545
        %v749 = vpop.f32.mrf.mxu0
        %v750 = vadd.f32 0.0, %v749
        %v751 = vpop.f32.mrf.mxu0
        %752 = vdwg.mxu0
        %753 = vmatpush.bf16.msra.mxu0 0
        %754 = vmatpush.bf16.msra.mxu0 0
        %755 = vmatpush.bf16.msra.mxu0 0
        %756 = vmatpush.bf16.msra.mxu0 0
        %757 = vmatpush.bf16.msra.mxu0 0
        %758 = vmatpush.bf16.msra.mxu0 0
        %759 = vmatpush.bf16.msra.mxu0 %v737
        %760 = vmatpush.bf16.msra.mxu0 %v736
        %761 = vmatmul.bf16.gmra.mxu0 %v561
        %v762 = vpop.f32.mrf.mxu0
        %v763 = vadd.f32 0.0, %v762
        %v764 = vpop.f32.mrf.mxu0
        %765 = vdwg.mxu0
        %v770 = vunpack.c.l.b16 %v508
        %v771 = vunpack.c.l.b16 %v509
        %v772 = vunpack.c.l.b16 %v510
        %v773 = vunpack.c.l.b16 %v511
        %v774 = vpack.c.b16 %v771, %v770
        %v775 = vpack.c.b16 %v773, %v772
        %778 = vmatpush.bf16.msra.mxu0 0
        %779 = vmatpush.bf16.msra.mxu0 0
        %780 = vmatpush.bf16.msra.mxu0 0
        %781 = vmatpush.bf16.msra.mxu0 0
        %782 = vmatpush.bf16.msra.mxu0 0
        %783 = vmatpush.bf16.msra.mxu0 0
        %784 = vmatpush.bf16.msra.mxu0 %v775
        %785 = vmatpush.bf16.msra.mxu0 %v774
        %786 = vmatmul.bf16.gmra.mxu0 %v545
        %v787 = vpop.f32.mrf.mxu0
        %v788 = vadd.f32 0.0, %v787
        %v789 = vpop.f32.mrf.mxu0
        %790 = vdwg.mxu0
        %791 = vmatpush.bf16.msra.mxu0 0
        %792 = vmatpush.bf16.msra.mxu0 0
        %793 = vmatpush.bf16.msra.mxu0 0
        %794 = vmatpush.bf16.msra.mxu0 0
        %795 = vmatpush.bf16.msra.mxu0 0
        %796 = vmatpush.bf16.msra.mxu0 0
        %797 = vmatpush.bf16.msra.mxu0 %v775
        %798 = vmatpush.bf16.msra.mxu0 %v774
        %799 = vmatmul.bf16.gmra.mxu0 %v561
        %v800 = vpop.f32.mrf.mxu0
        %v801 = vadd.f32 0.0, %v800
        %v802 = vpop.f32.mrf.mxu0
        %803 = vdwg.mxu0
        %v808 = vunpack.c.l.b16 %v512
        %v809 = vunpack.c.l.b16 %v513
        %v810 = vunpack.c.l.b16 %v514
        %v811 = vunpack.c.l.b16 %v515
        %v812 = vpack.c.b16 %v809, %v808
        %v813 = vpack.c.b16 %v811, %v810
        %816 = vmatpush.bf16.msra.mxu0 0
        %817 = vmatpush.bf16.msra.mxu0 0
        %818 = vmatpush.bf16.msra.mxu0 0
        %819 = vmatpush.bf16.msra.mxu0 0
        %820 = vmatpush.bf16.msra.mxu0 0
        %821 = vmatpush.bf16.msra.mxu0 0
        %822 = vmatpush.bf16.msra.mxu0 %v813
        %823 = vmatpush.bf16.msra.mxu0 %v812
        %824 = vmatmul.bf16.gmra.mxu0 %v545
        %v825 = vpop.f32.mrf.mxu0
        %v826 = vadd.f32 0.0, %v825
        %v827 = vpop.f32.mrf.mxu0
        %828 = vdwg.mxu0
        %829 = vmatpush.bf16.msra.mxu0 0
        %830 = vmatpush.bf16.msra.mxu0 0
        %831 = vmatpush.bf16.msra.mxu0 0
        %832 = vmatpush.bf16.msra.mxu0 0
        %833 = vmatpush.bf16.msra.mxu0 0
        %834 = vmatpush.bf16.msra.mxu0 0
        %835 = vmatpush.bf16.msra.mxu0 %v813
        %836 = vmatpush.bf16.msra.mxu0 %v812
        %837 = vmatmul.bf16.gmra.mxu0 %v561
        %v838 = vpop.f32.mrf.mxu0
        %v839 = vadd.f32 0.0, %v838
        %v840 = vpop.f32.mrf.mxu0
        %841 = vdwg.mxu0
        %v846 = vunpack.c.l.b16 %v516
        %v847 = vunpack.c.l.b16 %v517
        %v848 = vunpack.c.l.b16 %v518
        %v849 = vunpack.c.l.b16 %v519
        %v850 = vpack.c.b16 %v847, %v846
        %v851 = vpack.c.b16 %v849, %v848
        %854 = vmatpush.bf16.msra.mxu0 0
        %855 = vmatpush.bf16.msra.mxu0 0
        %856 = vmatpush.bf16.msra.mxu0 0
        %857 = vmatpush.bf16.msra.mxu0 0
        %858 = vmatpush.bf16.msra.mxu0 0
        %859 = vmatpush.bf16.msra.mxu0 0
        %860 = vmatpush.bf16.msra.mxu0 %v851
        %861 = vmatpush.bf16.msra.mxu0 %v850
        %862 = vmatmul.bf16.gmra.mxu0 %v545
        %v863 = vpop.f32.mrf.mxu0
        %v864 = vadd.f32 0.0, %v863
        %v865 = vpop.f32.mrf.mxu0
        %866 = vdwg.mxu0
        %867 = vmatpush.bf16.msra.mxu0 0
        %868 = vmatpush.bf16.msra.mxu0 0
        %869 = vmatpush.bf16.msra.mxu0 0
        %870 = vmatpush.bf16.msra.mxu0 0
        %871 = vmatpush.bf16.msra.mxu0 0
        %872 = vmatpush.bf16.msra.mxu0 0
        %873 = vmatpush.bf16.msra.mxu0 %v851
        %874 = vmatpush.bf16.msra.mxu0 %v850
        %875 = vmatmul.bf16.gmra.mxu0 %v561
        %v876 = vpop.f32.mrf.mxu0
        %v877 = vadd.f32 0.0, %v876
        %v878 = vpop.f32.mrf.mxu0
        %879 = vdwg.mxu0
        %v884 = vunpack.c.l.b16 %v520
        %v885 = vunpack.c.l.b16 %v521
        %v886 = vunpack.c.l.b16 %v522
        %v887 = vunpack.c.l.b16 %v523
        %v888 = vpack.c.b16 %v885, %v884
        %v889 = vpack.c.b16 %v887, %v886
        %892 = vmatpush.bf16.msra.mxu0 0
        %893 = vmatpush.bf16.msra.mxu0 0
        %894 = vmatpush.bf16.msra.mxu0 0
        %895 = vmatpush.bf16.msra.mxu0 0
        %896 = vmatpush.bf16.msra.mxu0 0
        %897 = vmatpush.bf16.msra.mxu0 0
        %898 = vmatpush.bf16.msra.mxu0 %v889
        %899 = vmatpush.bf16.msra.mxu0 %v888
        %900 = vmatmul.bf16.gmra.mxu0 %v545
        %v901 = vpop.f32.mrf.mxu0
        %v902 = vadd.f32 0.0, %v901
        %v903 = vpop.f32.mrf.mxu0
        %904 = vdwg.mxu0
        %905 = vmatpush.bf16.msra.mxu0 0
        %906 = vmatpush.bf16.msra.mxu0 0
        %907 = vmatpush.bf16.msra.mxu0 0
        %908 = vmatpush.bf16.msra.mxu0 0
        %909 = vmatpush.bf16.msra.mxu0 0
        %910 = vmatpush.bf16.msra.mxu0 0
        %911 = vmatpush.bf16.msra.mxu0 %v889
        %912 = vmatpush.bf16.msra.mxu0 %v888
        %913 = vmatmul.bf16.gmra.mxu0 %v561
        %v914 = vpop.f32.mrf.mxu0
        %v915 = vadd.f32 0.0, %v914
        %v916 = vpop.f32.mrf.mxu0
        %917 = vdwg.mxu0
        %v922 = vunpack.c.l.b16 %v524
        %v923 = vunpack.c.l.b16 %v525
        %v924 = vunpack.c.l.b16 %v526
        %v925 = vunpack.c.l.b16 %v527
        %v926 = vpack.c.b16 %v923, %v922
        %v927 = vpack.c.b16 %v925, %v924
        %930 = vmatpush.bf16.msra.mxu0 0
        %931 = vmatpush.bf16.msra.mxu0 0
        %932 = vmatpush.bf16.msra.mxu0 0
        %933 = vmatpush.bf16.msra.mxu0 0
        %934 = vmatpush.bf16.msra.mxu0 0
        %935 = vmatpush.bf16.msra.mxu0 0
        %936 = vmatpush.bf16.msra.mxu0 %v927
        %937 = vmatpush.bf16.msra.mxu0 %v926
        %938 = vmatmul.bf16.gmra.mxu0 %v545
        %v939 = vpop.f32.mrf.mxu0
        %v940 = vadd.f32 0.0, %v939
        %v941 = vpop.f32.mrf.mxu0
        %942 = vdwg.mxu0
        %943 = vmatpush.bf16.msra.mxu0 0
        %944 = vmatpush.bf16.msra.mxu0 0
        %945 = vmatpush.bf16.msra.mxu0 0
        %946 = vmatpush.bf16.msra.mxu0 0
        %947 = vmatpush.bf16.msra.mxu0 0
        %948 = vmatpush.bf16.msra.mxu0 0
        %949 = vmatpush.bf16.msra.mxu0 %v927
        %950 = vmatpush.bf16.msra.mxu0 %v926
        %951 = vmatmul.bf16.gmra.mxu0 %v561
        %v952 = vpop.f32.mrf.mxu0
        %v953 = vadd.f32 0.0, %v952
        %v954 = vpop.f32.mrf.mxu0
        %955 = vdwg.mxu0
        %v960 = vunpack.c.l.b16 %v528
        %v961 = vunpack.c.l.b16 %v529
        %v962 = vunpack.c.l.b16 %v530
        %v963 = vunpack.c.l.b16 %v531
        %v964 = vpack.c.b16 %v961, %v960
        %v965 = vpack.c.b16 %v963, %v962
        %968 = vmatpush.bf16.msra.mxu0 0
        %969 = vmatpush.bf16.msra.mxu0 0
        %970 = vmatpush.bf16.msra.mxu0 0
        %971 = vmatpush.bf16.msra.mxu0 0
        %972 = vmatpush.bf16.msra.mxu0 0
        %973 = vmatpush.bf16.msra.mxu0 0
        %974 = vmatpush.bf16.msra.mxu0 %v965
        %975 = vmatpush.bf16.msra.mxu0 %v964
        %976 = vmatmul.bf16.gmra.mxu0 %v545
        %v977 = vpop.f32.mrf.mxu0
        %v978 = vadd.f32 0.0, %v977
        %v979 = vpop.f32.mrf.mxu0
        %980 = vdwg.mxu0
        %981 = vmatpush.bf16.msra.mxu0 0
        %982 = vmatpush.bf16.msra.mxu0 0
        %983 = vmatpush.bf16.msra.mxu0 0
        %984 = vmatpush.bf16.msra.mxu0 0
        %985 = vmatpush.bf16.msra.mxu0 0
        %986 = vmatpush.bf16.msra.mxu0 0
        %987 = vmatpush.bf16.msra.mxu0 %v965
        %988 = vmatpush.bf16.msra.mxu0 %v964
        %989 = vmatmul.bf16.gmra.mxu0 %v561
        %v990 = vpop.f32.mrf.mxu0
        %v991 = vadd.f32 0.0, %v990
        %v992 = vpop.f32.mrf.mxu0
        %993 = vdwg.mxu0
        %v994 = vpack.c.bf16 %v557, %v557
        %v995 = vpack.c.bf16 %v573, %v573
        %v996 = vpack.c.bf16 %v598, %v598
        %v997 = vpack.c.bf16 %v611, %v611
        %v998 = vpack.c.bf16 %v636, %v636
        %v999 = vpack.c.bf16 %v649, %v649
        %v1000 = vpack.c.bf16 %v674, %v674
        %v1001 = vpack.c.bf16 %v687, %v687
        %v1002 = vpack.c.bf16 %v712, %v712
        %v1003 = vpack.c.bf16 %v725, %v725
        %v1004 = vpack.c.bf16 %v750, %v750
        %v1005 = vpack.c.bf16 %v763, %v763
        %v1006 = vpack.c.bf16 %v788, %v788
        %v1007 = vpack.c.bf16 %v801, %v801
        %v1008 = vpack.c.bf16 %v826, %v826
        %v1009 = vpack.c.bf16 %v839, %v839
        %v1010 = vpack.c.bf16 %v864, %v864
        %v1011 = vpack.c.bf16 %v877, %v877
        %v1012 = vpack.c.bf16 %v902, %v902
        %v1013 = vpack.c.bf16 %v915, %v915
        %v1014 = vpack.c.bf16 %v940, %v940
        %v1015 = vpack.c.bf16 %v953, %v953
        %v1016 = vpack.c.bf16 %v978, %v978
        %v1017 = vpack.c.bf16 %v991, %v991
        %v1018 = vld [vmem:[%s3] sm:$0xff]
        %vm1019 = vcmask 64512
        %v1021 = vsel %vm1019, %v994, 0
        %v1024 = vsel %vm1019, %v1002, 0
        %1026 = vmatpush.bf16.xpose.msra.mxu0 0
        %1027 = vmatpush.bf16.xpose.msra.mxu0 0
        %1028 = vmatpush.bf16.xpose.msra.mxu0 0
        %1029 = vmatpush.bf16.xpose.msra.mxu0 0
        %1030 = vmatpush.bf16.xpose.msra.mxu0 0
        %1031 = vmatpush.bf16.xpose.msra.mxu0 0
        %1032 = vmatpush.bf16.xpose.msra.mxu0 0
        %1033 = vmatpush.bf16.xpose.msra.mxu0 %v1024
        %1034 = vmatmul.bf16.gmra.mxu0 %v1021
        %v1035 = vpop.f32.mrf.mxu0
        %v1036 = vadd.f32 %v1018, %v1035
        %v1037 = vpop.f32.mrf.mxu0
        %1038 = vdwg.mxu0
        %v1040 = vsel %vm1019, %v995, 0
        %v1043 = vsel %vm1019, %v1003, 0
        %1045 = vmatpush.bf16.xpose.msra.mxu0 0
        %1046 = vmatpush.bf16.xpose.msra.mxu0 0
        %1047 = vmatpush.bf16.xpose.msra.mxu0 0
        %1048 = vmatpush.bf16.xpose.msra.mxu0 0
        %1049 = vmatpush.bf16.xpose.msra.mxu0 0
        %1050 = vmatpush.bf16.xpose.msra.mxu0 0
        %1051 = vmatpush.bf16.xpose.msra.mxu0 0
        %1052 = vmatpush.bf16.xpose.msra.mxu0 %v1043
        %1053 = vmatmul.bf16.gmra.mxu0 %v1040
        %v1054 = vpop.f32.mrf.mxu0
        %v1055 = vadd.f32 %v1018, %v1054
        %v1056 = vpop.f32.mrf.mxu0
        %1057 = vdwg.mxu0
        %v1059 = vsel %vm1019, %v996, 0
        %v1062 = vsel %vm1019, %v1004, 0
        %1064 = vmatpush.bf16.xpose.msra.mxu0 0
        %1065 = vmatpush.bf16.xpose.msra.mxu0 0
        %1066 = vmatpush.bf16.xpose.msra.mxu0 0
        %1067 = vmatpush.bf16.xpose.msra.mxu0 0
        %1068 = vmatpush.bf16.xpose.msra.mxu0 0
        %1069 = vmatpush.bf16.xpose.msra.mxu0 0
        %1070 = vmatpush.bf16.xpose.msra.mxu0 0
        %1071 = vmatpush.bf16.xpose.msra.mxu0 %v1062
        %1072 = vmatmul.bf16.gmra.mxu0 %v1059
        %v1073 = vpop.f32.mrf.mxu0
        %v1074 = vadd.f32 %v1018, %v1073
        %v1075 = vpop.f32.mrf.mxu0
        %1076 = vdwg.mxu0
        %v1078 = vsel %vm1019, %v997, 0
        %v1081 = vsel %vm1019, %v1005, 0
        %1083 = vmatpush.bf16.xpose.msra.mxu0 0
        %1084 = vmatpush.bf16.xpose.msra.mxu0 0
        %1085 = vmatpush.bf16.xpose.msra.mxu0 0
        %1086 = vmatpush.bf16.xpose.msra.mxu0 0
        %1087 = vmatpush.bf16.xpose.msra.mxu0 0
        %1088 = vmatpush.bf16.xpose.msra.mxu0 0
        %1089 = vmatpush.bf16.xpose.msra.mxu0 0
        %1090 = vmatpush.bf16.xpose.msra.mxu0 %v1081
        %1091 = vmatmul.bf16.gmra.mxu0 %v1078
        %v1092 = vpop.f32.mrf.mxu0
        %v1093 = vadd.f32 %v1018, %v1092
        %v1094 = vpop.f32.mrf.mxu0
        %1095 = vdwg.mxu0
        %v1097 = vsel %vm1019, %v998, 0
        %v1100 = vsel %vm1019, %v1006, 0
        %1102 = vmatpush.bf16.xpose.msra.mxu0 0
        %1103 = vmatpush.bf16.xpose.msra.mxu0 0
        %1104 = vmatpush.bf16.xpose.msra.mxu0 0
        %1105 = vmatpush.bf16.xpose.msra.mxu0 0
        %1106 = vmatpush.bf16.xpose.msra.mxu0 0
        %1107 = vmatpush.bf16.xpose.msra.mxu0 0
        %1108 = vmatpush.bf16.xpose.msra.mxu0 0
        %1109 = vmatpush.bf16.xpose.msra.mxu0 %v1100
        %1110 = vmatmul.bf16.gmra.mxu0 %v1097
        %v1111 = vpop.f32.mrf.mxu0
        %v1112 = vadd.f32 %v1018, %v1111
        %v1113 = vpop.f32.mrf.mxu0
        %1114 = vdwg.mxu0
        %v1116 = vsel %vm1019, %v999, 0
        %v1119 = vsel %vm1019, %v1007, 0
        %1121 = vmatpush.bf16.xpose.msra.mxu0 0
        %1122 = vmatpush.bf16.xpose.msra.mxu0 0
        %1123 = vmatpush.bf16.xpose.msra.mxu0 0
        %1124 = vmatpush.bf16.xpose.msra.mxu0 0
        %1125 = vmatpush.bf16.xpose.msra.mxu0 0
        %1126 = vmatpush.bf16.xpose.msra.mxu0 0
        %1127 = vmatpush.bf16.xpose.msra.mxu0 0
        %1128 = vmatpush.bf16.xpose.msra.mxu0 %v1119
        %1129 = vmatmul.bf16.gmra.mxu0 %v1116
        %v1130 = vpop.f32.mrf.mxu0
        %v1131 = vadd.f32 %v1018, %v1130
        %v1132 = vpop.f32.mrf.mxu0
        %1133 = vdwg.mxu0
        %v1135 = vsel %vm1019, %v1000, 0
        %v1138 = vsel %vm1019, %v1008, 0
        %1140 = vmatpush.bf16.xpose.msra.mxu0 0
        %1141 = vmatpush.bf16.xpose.msra.mxu0 0
        %1142 = vmatpush.bf16.xpose.msra.mxu0 0
        %1143 = vmatpush.bf16.xpose.msra.mxu0 0
        %1144 = vmatpush.bf16.xpose.msra.mxu0 0
        %1145 = vmatpush.bf16.xpose.msra.mxu0 0
        %1146 = vmatpush.bf16.xpose.msra.mxu0 0
        %1147 = vmatpush.bf16.xpose.msra.mxu0 %v1138
        %1148 = vmatmul.bf16.gmra.mxu0 %v1135
        %v1149 = vpop.f32.mrf.mxu0
        %v1150 = vadd.f32 %v1018, %v1149
        %v1151 = vpop.f32.mrf.mxu0
        %1152 = vdwg.mxu0
        %v1154 = vsel %vm1019, %v1001, 0
        %v1157 = vsel %vm1019, %v1009, 0
        %1159 = vmatpush.bf16.xpose.msra.mxu0 0
        %1160 = vmatpush.bf16.xpose.msra.mxu0 0
        %1161 = vmatpush.bf16.xpose.msra.mxu0 0
        %1162 = vmatpush.bf16.xpose.msra.mxu0 0
        %1163 = vmatpush.bf16.xpose.msra.mxu0 0
        %1164 = vmatpush.bf16.xpose.msra.mxu0 0
        %1165 = vmatpush.bf16.xpose.msra.mxu0 0
        %1166 = vmatpush.bf16.xpose.msra.mxu0 %v1157
        %1167 = vmatmul.bf16.gmra.mxu0 %v1154
        %v1168 = vpop.f32.mrf.mxu0
        %v1169 = vadd.f32 %v1018, %v1168
        %v1170 = vpop.f32.mrf.mxu0
        %1171 = vdwg.mxu0
        %v1172 = vsel %vm1019, %v1036, -inf
        %1173 = vmax.xlane.f32.xlu0 %v1172
        %v1174 = vpop.xlane.xlu0 %1173
        %v1175 = vsel %vm1019, %v1055, -inf
        %1176 = vmax.xlane.f32.xlu0 %v1175
        %v1177 = vpop.xlane.xlu0 %1176
        %v1178 = vsel %vm1019, %v1074, -inf
        %1179 = vmax.xlane.f32.xlu0 %v1178
        %v1180 = vpop.xlane.xlu0 %1179
        %v1181 = vsel %vm1019, %v1093, -inf
        %1182 = vmax.xlane.f32.xlu0 %v1181
        %v1183 = vpop.xlane.xlu0 %1182
        %v1184 = vsel %vm1019, %v1112, -inf
        %1185 = vmax.xlane.f32.xlu0 %v1184
        %v1186 = vpop.xlane.xlu0 %1185
        %v1187 = vsel %vm1019, %v1131, -inf
        %1188 = vmax.xlane.f32.xlu0 %v1187
        %v1189 = vpop.xlane.xlu0 %1188
        %v1190 = vsel %vm1019, %v1150, -inf
        %1191 = vmax.xlane.f32.xlu0 %v1190
        %v1192 = vpop.xlane.xlu0 %1191
        %v1193 = vsel %vm1019, %v1169, -inf
        %1194 = vmax.xlane.f32.xlu0 %v1193
        %v1195 = vpop.xlane.xlu0 %1194
        %v1196 = vsub.f32 %v1036, %v1174
        %v1197 = vsub.f32 %v1055, %v1177
        %v1198 = vsub.f32 %v1074, %v1180
        %v1199 = vsub.f32 %v1093, %v1183
        %v1200 = vsub.f32 %v1112, %v1186
        %v1201 = vsub.f32 %v1131, %v1189
        %v1202 = vsub.f32 %v1150, %v1192
        %v1203 = vsub.f32 %v1169, %v1195
        %v1204 = vmul.f32 %v1196, 1.442695
        %v1205 = vpow.pop %v1204
        %v1206 = vmul.f32 %v1197, 1.442695
        %v1207 = vpow.pop %v1206
        %v1208 = vmul.f32 %v1198, 1.442695
        %v1209 = vpow.pop %v1208
        %v1210 = vmul.f32 %v1199, 1.442695
        %v1211 = vpow.pop %v1210
        %v1212 = vmul.f32 %v1200, 1.442695
        %v1213 = vpow.pop %v1212
        %v1214 = vmul.f32 %v1201, 1.442695
        %v1215 = vpow.pop %v1214
        %v1216 = vmul.f32 %v1202, 1.442695
        %v1217 = vpow.pop %v1216
        %v1218 = vmul.f32 %v1203, 1.442695
        %v1219 = vpow.pop %v1218
        %v1220 = vsel %vm1019, %v1205, 0.0
        %1221 = vadd.xlane.f32.xlu0 %v1220
        %v1222 = vpop.xlane.xlu0 %1221
        %v1223 = vsel %vm1019, %v1207, 0.0
        %1224 = vadd.xlane.f32.xlu0 %v1223
        %v1225 = vpop.xlane.xlu0 %1224
        %v1226 = vsel %vm1019, %v1209, 0.0
        %1227 = vadd.xlane.f32.xlu0 %v1226
        %v1228 = vpop.xlane.xlu0 %1227
        %v1229 = vsel %vm1019, %v1211, 0.0
        %1230 = vadd.xlane.f32.xlu0 %v1229
        %v1231 = vpop.xlane.xlu0 %1230
        %v1232 = vsel %vm1019, %v1213, 0.0
        %1233 = vadd.xlane.f32.xlu0 %v1232
        %v1234 = vpop.xlane.xlu0 %1233
        %v1235 = vsel %vm1019, %v1215, 0.0
        %1236 = vadd.xlane.f32.xlu0 %v1235
        %v1237 = vpop.xlane.xlu0 %1236
        %v1238 = vsel %vm1019, %v1217, 0.0
        %1239 = vadd.xlane.f32.xlu0 %v1238
        %v1240 = vpop.xlane.xlu0 %1239
        %v1241 = vsel %vm1019, %v1219, 0.0
        %1242 = vadd.xlane.f32.xlu0 %v1241
        %v1243 = vpop.xlane.xlu0 %1242
        %v1244 = vrcp.pop %v1222
        %v1245 = vrcp.pop %v1225
        %v1246 = vrcp.pop %v1228
        %v1247 = vrcp.pop %v1231
        %v1248 = vrcp.pop %v1234
        %v1249 = vrcp.pop %v1237
        %v1250 = vrcp.pop %v1240
        %v1251 = vrcp.pop %v1243
        %v1252 = vmul.f32 %v1205, %v1244
        %v1253 = vmul.f32 %v1207, %v1245
        %v1254 = vmul.f32 %v1209, %v1246
        %v1255 = vmul.f32 %v1211, %v1247
        %v1256 = vmul.f32 %v1213, %v1248
        %v1257 = vmul.f32 %v1215, %v1249
        %v1258 = vmul.f32 %v1217, %v1250
        %v1259 = vmul.f32 %v1219, %v1251
        %v1260 = vpack.c.bf16 %v1252, %v1252
        %v1261 = vpack.c.bf16 %v1253, %v1253
        %v1262 = vpack.c.bf16 %v1254, %v1254
        %v1263 = vpack.c.bf16 %v1255, %v1255
        %v1264 = vpack.c.bf16 %v1256, %v1256
        %v1265 = vpack.c.bf16 %v1257, %v1257
        %v1266 = vpack.c.bf16 %v1258, %v1258
        %v1267 = vpack.c.bf16 %v1259, %v1259
        %v1269 = vsel %vm1019, %v1260, 0
        %vm1271 = vcmask 1043456
        %v1273 = vsel %vm1271, %v1010, 0
        %1275 = vmatpush.bf16.msra.mxu0 0
        %1276 = vmatpush.bf16.msra.mxu0 0
        %1277 = vmatpush.bf16.msra.mxu0 0
        %1278 = vmatpush.bf16.msra.mxu0 0
        %1279 = vmatpush.bf16.msra.mxu0 0
        %1280 = vmatpush.bf16.msra.mxu0 0
        %1281 = vmatpush.bf16.msra.mxu0 0
        %1282 = vmatpush.bf16.msra.mxu0 %v1273
        %1283 = vmatmul.bf16.gmra.mxu0 %v1269
        %v1284 = vpop.f32.mrf.mxu0
        %v1285 = vadd.f32 0.0, %v1284
        %v1286 = vpop.f32.mrf.mxu0
        %1287 = vdwg.mxu0
        %v1289 = vsel %vm1019, %v1261, 0
        %v1292 = vsel %vm1271, %v1011, 0
        %1294 = vmatpush.bf16.msra.mxu0 0
        %1295 = vmatpush.bf16.msra.mxu0 0
        %1296 = vmatpush.bf16.msra.mxu0 0
        %1297 = vmatpush.bf16.msra.mxu0 0
        %1298 = vmatpush.bf16.msra.mxu0 0
        %1299 = vmatpush.bf16.msra.mxu0 0
        %1300 = vmatpush.bf16.msra.mxu0 0
        %1301 = vmatpush.bf16.msra.mxu0 %v1292
        %1302 = vmatmul.bf16.gmra.mxu0 %v1289
        %v1303 = vpop.f32.mrf.mxu0
        %v1304 = vadd.f32 0.0, %v1303
        %v1305 = vpop.f32.mrf.mxu0
        %1306 = vdwg.mxu0
        %v1308 = vsel %vm1019, %v1262, 0
        %v1311 = vsel %vm1271, %v1012, 0
        %1313 = vmatpush.bf16.msra.mxu0 0
        %1314 = vmatpush.bf16.msra.mxu0 0
        %1315 = vmatpush.bf16.msra.mxu0 0
        %1316 = vmatpush.bf16.msra.mxu0 0
        %1317 = vmatpush.bf16.msra.mxu0 0
        %1318 = vmatpush.bf16.msra.mxu0 0
        %1319 = vmatpush.bf16.msra.mxu0 0
        %1320 = vmatpush.bf16.msra.mxu0 %v1311
        %1321 = vmatmul.bf16.gmra.mxu0 %v1308
        %v1322 = vpop.f32.mrf.mxu0
        %v1323 = vadd.f32 0.0, %v1322
        %v1324 = vpop.f32.mrf.mxu0
        %1325 = vdwg.mxu0
        %v1327 = vsel %vm1019, %v1263, 0
        %v1330 = vsel %vm1271, %v1013, 0
        %1332 = vmatpush.bf16.msra.mxu0 0
        %1333 = vmatpush.bf16.msra.mxu0 0
        %1334 = vmatpush.bf16.msra.mxu0 0
        %1335 = vmatpush.bf16.msra.mxu0 0
        %1336 = vmatpush.bf16.msra.mxu0 0
        %1337 = vmatpush.bf16.msra.mxu0 0
        %1338 = vmatpush.bf16.msra.mxu0 0
        %1339 = vmatpush.bf16.msra.mxu0 %v1330
        %1340 = vmatmul.bf16.gmra.mxu0 %v1327
        %v1341 = vpop.f32.mrf.mxu0
        %v1342 = vadd.f32 0.0, %v1341
        %v1343 = vpop.f32.mrf.mxu0
        %1344 = vdwg.mxu0
        %v1346 = vsel %vm1019, %v1264, 0
        %v1349 = vsel %vm1271, %v1014, 0
        %1351 = vmatpush.bf16.msra.mxu0 0
        %1352 = vmatpush.bf16.msra.mxu0 0
        %1353 = vmatpush.bf16.msra.mxu0 0
        %1354 = vmatpush.bf16.msra.mxu0 0
        %1355 = vmatpush.bf16.msra.mxu0 0
        %1356 = vmatpush.bf16.msra.mxu0 0
        %1357 = vmatpush.bf16.msra.mxu0 0
        %1358 = vmatpush.bf16.msra.mxu0 %v1349
        %1359 = vmatmul.bf16.gmra.mxu0 %v1346
        %v1360 = vpop.f32.mrf.mxu0
        %v1361 = vadd.f32 0.0, %v1360
        %v1362 = vpop.f32.mrf.mxu0
        %1363 = vdwg.mxu0
        %v1365 = vsel %vm1019, %v1265, 0
        %v1368 = vsel %vm1271, %v1015, 0
        %1370 = vmatpush.bf16.msra.mxu0 0
        %1371 = vmatpush.bf16.msra.mxu0 0
        %1372 = vmatpush.bf16.msra.mxu0 0
        %1373 = vmatpush.bf16.msra.mxu0 0
        %1374 = vmatpush.bf16.msra.mxu0 0
        %1375 = vmatpush.bf16.msra.mxu0 0
        %1376 = vmatpush.bf16.msra.mxu0 0
        %1377 = vmatpush.bf16.msra.mxu0 %v1368
        %1378 = vmatmul.bf16.gmra.mxu0 %v1365
        %v1379 = vpop.f32.mrf.mxu0
        %v1380 = vadd.f32 0.0, %v1379
        %v1381 = vpop.f32.mrf.mxu0
        %1382 = vdwg.mxu0
        %v1384 = vsel %vm1019, %v1266, 0
        %v1387 = vsel %vm1271, %v1016, 0
        %1389 = vmatpush.bf16.msra.mxu0 0
        %1390 = vmatpush.bf16.msra.mxu0 0
        %1391 = vmatpush.bf16.msra.mxu0 0
        %1392 = vmatpush.bf16.msra.mxu0 0
        %1393 = vmatpush.bf16.msra.mxu0 0
        %1394 = vmatpush.bf16.msra.mxu0 0
        %1395 = vmatpush.bf16.msra.mxu0 0
        %1396 = vmatpush.bf16.msra.mxu0 %v1387
        %1397 = vmatmul.bf16.gmra.mxu0 %v1384
        %v1398 = vpop.f32.mrf.mxu0
        %v1399 = vadd.f32 0.0, %v1398
        %v1400 = vpop.f32.mrf.mxu0
        %1401 = vdwg.mxu0
        %v1403 = vsel %vm1019, %v1267, 0
        %v1406 = vsel %vm1271, %v1017, 0
        %1408 = vmatpush.bf16.msra.mxu0 0
        %1409 = vmatpush.bf16.msra.mxu0 0
        %1410 = vmatpush.bf16.msra.mxu0 0
        %1411 = vmatpush.bf16.msra.mxu0 0
        %1412 = vmatpush.bf16.msra.mxu0 0
        %1413 = vmatpush.bf16.msra.mxu0 0
        %1414 = vmatpush.bf16.msra.mxu0 0
        %1415 = vmatpush.bf16.msra.mxu0 %v1406
        %1416 = vmatmul.bf16.gmra.mxu0 %v1403
        %v1417 = vpop.f32.mrf.mxu0
        %v1418 = vadd.f32 0.0, %v1417
        %v1419 = vpop.f32.mrf.mxu0
        %1420 = vdwg.mxu0
        %v1421 = vld [vmem:[%s2] sm:$0xf]
        %v1422 = vld [vmem:[%s2 + $0x4] sm:$0xf]
        %v1423 = vld [vmem:[%s2 + $0x8] sm:$0xf]
        %v1424 = vld [vmem:[%s2 + $0xc] sm:$0xf]
        %v1425 = vpack.c.bf16 %v1285, %v1285
        %v1426 = vpack.c.bf16 %v1304, %v1304
        %v1427 = vpack.c.bf16 %v1323, %v1323
        %v1428 = vpack.c.bf16 %v1342, %v1342
        %v1429 = vpack.c.bf16 %v1361, %v1361
        %v1430 = vpack.c.bf16 %v1380, %v1380
        %v1431 = vpack.c.bf16 %v1399, %v1399
        %v1432 = vpack.c.bf16 %v1418, %v1418
        %v1434 = vsel %vm1019, %v1425, 0
        %v1437 = vsel %vm1271, %v1421, 0
        %1439 = vmatpush.bf16.msra.mxu0 0
        %1440 = vmatpush.bf16.msra.mxu0 0
        %1441 = vmatpush.bf16.msra.mxu0 0
        %1442 = vmatpush.bf16.msra.mxu0 0
        %1443 = vmatpush.bf16.msra.mxu0 0
        %1444 = vmatpush.bf16.msra.mxu0 0
        %1445 = vmatpush.bf16.msra.mxu0 0
        %1446 = vmatpush.bf16.msra.mxu0 %v1437
        %1447 = vmatmul.bf16.gmra.mxu0 %v1434
        %v1448 = vpop.f32.mrf.mxu0
        %v1449 = vadd.f32 0.0, %v1448
        %v1450 = vpop.f32.mrf.mxu0
        %1451 = vdwg.mxu0
        %v1453 = vsel %vm1019, %v1426, 0
        %1455 = vmatpush.bf16.msra.mxu0 0
        %1456 = vmatpush.bf16.msra.mxu0 0
        %1457 = vmatpush.bf16.msra.mxu0 0
        %1458 = vmatpush.bf16.msra.mxu0 0
        %1459 = vmatpush.bf16.msra.mxu0 0
        %1460 = vmatpush.bf16.msra.mxu0 0
        %1461 = vmatpush.bf16.msra.mxu0 0
        %1462 = vmatpush.bf16.msra.mxu0 %v1437
        %1463 = vmatmul.bf16.gmra.mxu0 %v1453
        %v1464 = vpop.f32.mrf.mxu0
        %v1465 = vadd.f32 0.0, %v1464
        %v1466 = vpop.f32.mrf.mxu0
        %1467 = vdwg.mxu0
        %v1469 = vsel %vm1019, %v1427, 0
        %v1472 = vsel %vm1271, %v1422, 0
        %1474 = vmatpush.bf16.msra.mxu0 0
        %1475 = vmatpush.bf16.msra.mxu0 0
        %1476 = vmatpush.bf16.msra.mxu0 0
        %1477 = vmatpush.bf16.msra.mxu0 0
        %1478 = vmatpush.bf16.msra.mxu0 0
        %1479 = vmatpush.bf16.msra.mxu0 0
        %1480 = vmatpush.bf16.msra.mxu0 0
        %1481 = vmatpush.bf16.msra.mxu0 %v1472
        %1482 = vmatmul.bf16.gmra.mxu0 %v1469
        %v1483 = vpop.f32.mrf.mxu0
        %v1484 = vadd.f32 0.0, %v1483
        %v1485 = vpop.f32.mrf.mxu0
        %1486 = vdwg.mxu0
        %v1488 = vsel %vm1019, %v1428, 0
        %1490 = vmatpush.bf16.msra.mxu0 0
        %1491 = vmatpush.bf16.msra.mxu0 0
        %1492 = vmatpush.bf16.msra.mxu0 0
        %1493 = vmatpush.bf16.msra.mxu0 0
        %1494 = vmatpush.bf16.msra.mxu0 0
        %1495 = vmatpush.bf16.msra.mxu0 0
        %1496 = vmatpush.bf16.msra.mxu0 0
        %1497 = vmatpush.bf16.msra.mxu0 %v1472
        %1498 = vmatmul.bf16.gmra.mxu0 %v1488
        %v1499 = vpop.f32.mrf.mxu0
        %v1500 = vadd.f32 0.0, %v1499
        %v1501 = vpop.f32.mrf.mxu0
        %1502 = vdwg.mxu0
        %v1504 = vsel %vm1019, %v1429, 0
        %v1507 = vsel %vm1271, %v1423, 0
        %1509 = vmatpush.bf16.msra.mxu0 0
        %1510 = vmatpush.bf16.msra.mxu0 0
        %1511 = vmatpush.bf16.msra.mxu0 0
        %1512 = vmatpush.bf16.msra.mxu0 0
        %1513 = vmatpush.bf16.msra.mxu0 0
        %1514 = vmatpush.bf16.msra.mxu0 0
        %1515 = vmatpush.bf16.msra.mxu0 0
        %1516 = vmatpush.bf16.msra.mxu0 %v1507
        %1517 = vmatmul.bf16.gmra.mxu0 %v1504
        %v1518 = vpop.f32.mrf.mxu0
        %v1519 = vadd.f32 0.0, %v1518
        %v1520 = vpop.f32.mrf.mxu0
        %1521 = vdwg.mxu0
        %v1523 = vsel %vm1019, %v1430, 0
        %1525 = vmatpush.bf16.msra.mxu0 0
        %1526 = vmatpush.bf16.msra.mxu0 0
        %1527 = vmatpush.bf16.msra.mxu0 0
        %1528 = vmatpush.bf16.msra.mxu0 0
        %1529 = vmatpush.bf16.msra.mxu0 0
        %1530 = vmatpush.bf16.msra.mxu0 0
        %1531 = vmatpush.bf16.msra.mxu0 0
        %1532 = vmatpush.bf16.msra.mxu0 %v1507
        %1533 = vmatmul.bf16.gmra.mxu0 %v1523
        %v1534 = vpop.f32.mrf.mxu0
        %v1535 = vadd.f32 0.0, %v1534
        %v1536 = vpop.f32.mrf.mxu0
        %1537 = vdwg.mxu0
        %v1539 = vsel %vm1019, %v1431, 0
        %v1542 = vsel %vm1271, %v1424, 0
        %1544 = vmatpush.bf16.msra.mxu0 0
        %1545 = vmatpush.bf16.msra.mxu0 0
        %1546 = vmatpush.bf16.msra.mxu0 0
        %1547 = vmatpush.bf16.msra.mxu0 0
        %1548 = vmatpush.bf16.msra.mxu0 0
        %1549 = vmatpush.bf16.msra.mxu0 0
        %1550 = vmatpush.bf16.msra.mxu0 0
        %1551 = vmatpush.bf16.msra.mxu0 %v1542
        %1552 = vmatmul.bf16.gmra.mxu0 %v1539
        %v1553 = vpop.f32.mrf.mxu0
        %v1554 = vadd.f32 0.0, %v1553
        %v1555 = vpop.f32.mrf.mxu0
        %1556 = vdwg.mxu0
        %v1558 = vsel %vm1019, %v1432, 0
        %1560 = vmatpush.bf16.msra.mxu0 0
        %1561 = vmatpush.bf16.msra.mxu0 0
        %1562 = vmatpush.bf16.msra.mxu0 0
        %1563 = vmatpush.bf16.msra.mxu0 0
        %1564 = vmatpush.bf16.msra.mxu0 0
        %1565 = vmatpush.bf16.msra.mxu0 0
        %1566 = vmatpush.bf16.msra.mxu0 0
        %1567 = vmatpush.bf16.msra.mxu0 %v1542
        %1568 = vmatmul.bf16.gmra.mxu0 %v1558
        %v1569 = vpop.f32.mrf.mxu0
        %v1570 = vadd.f32 0.0, %v1569
        %v1571 = vpop.f32.mrf.mxu0
        %1572 = vdwg.mxu0
        %v1573 = vsel %vm420, %v1449, 0.0
        %v1574 = vsel %vm420, %v1484, 0.0
        %v1575 = vadd.f32 %v1573, %v1574
        %v1576 = vsel %vm420, %v1519, 0.0
        %v1577 = vadd.f32 %v1575, %v1576
        %v1578 = vsel %vm420, %v1554, 0.0
        %v1579 = vadd.f32 %v1577, %v1578
        %v1580 = vsel %vm420, %v1465, 0.0
        %v1581 = vsel %vm420, %v1500, 0.0
        %v1582 = vadd.f32 %v1580, %v1581
        %v1583 = vsel %vm420, %v1535, 0.0
        %v1584 = vadd.f32 %v1582, %v1583
        %v1585 = vsel %vm420, %v1570, 0.0
        %v1586 = vadd.f32 %v1584, %v1585
        %v1587 = vadd.f32 %v416, %v1579
        %v1588 = vadd.f32 %v417, %v1586
        %v1589 = vld [vmem:[%s6] sm:$0x1]
        %v1590 = vld [vmem:[%s7] sm:$0x1]
        %v1591 = vsel %vm420, %v1587, 0.0
        %1592 = vadd.xlane.f32.xlu0 %v1591
        %v1593 = vpop.xlane.xlu0 %1592
        %v1594 = vsel %vm420, %v1588, 0.0
        %1595 = vadd.xlane.f32.xlu0 %v1594
        %v1596 = vpop.xlane.xlu0 %1595
        %v1597 = vmul.f32 %v1593, %v433
        %v1598 = vmul.f32 %v1596, %v433
        %v1599 = vsub.f32 %v1587, %v1597
        %v1600 = vsub.f32 %v1588, %v1598
        %v1601 = vmul.f32 %v1599, %v1599
        %v1602 = vmul.f32 %v1600, %v1600
        %v1603 = vsel %vm420, %v1601, 0.0
        %1604 = vadd.xlane.f32.xlu0 %v1603
        %v1605 = vpop.xlane.xlu0 %1604
        %v1606 = vsel %vm420, %v1602, 0.0
        %1607 = vadd.xlane.f32.xlu0 %v1606
        %v1608 = vpop.xlane.xlu0 %1607
        %v1609 = vmul.f32 %v1605, %v433
        %v1610 = vmul.f32 %v1608, %v433
        %v1611 = vadd.f32 %v1609, 1e-12
        %v1612 = vadd.f32 %v1610, 1e-12
        %v1613 = vrsqrt.pop %v1611
        %v1614 = vmul.f32 %v1613, %v1611
        %v1615 = vmul.f32 %v1614, %v1613
        %v1616 = vmul.f32 0.5, %v1615
        %v1617 = vsub.f32 1.5, %v1616
        %v1618 = vmul.f32 %v1613, %v1617
        %vm1619 = vweird.f32 %v1611
        %vm1620 = vweird.f32 %v1613
        %vm1621 = vmor %vm1619, %vm1620
        %v1622 = vsel %vm1621, %v1613, %v1618
        %v1623 = vrsqrt.pop %v1612
        %v1624 = vmul.f32 %v1623, %v1612
        %v1625 = vmul.f32 %v1624, %v1623
        %v1626 = vmul.f32 0.5, %v1625
        %v1627 = vsub.f32 1.5, %v1626
        %v1628 = vmul.f32 %v1623, %v1627
        %vm1629 = vweird.f32 %v1612
        %vm1630 = vweird.f32 %v1623
        %vm1631 = vmor %vm1629, %vm1630
        %v1632 = vsel %vm1631, %v1623, %v1628
        %v1633 = vmul.f32 %v1599, %v1622
        %v1634 = vmul.f32 %v1600, %v1632
        %v1636 = vperm.slane %v1589, 0
        %v1638 = vmul.f32 %v1633, %v1636
        %v1639 = vmul.f32 %v1634, %v1636
        %v1641 = vperm.slane %v1590, 0
        %v1643 = vadd.f32 %v1638, %v1641
        %v1644 = vadd.f32 %v1639, %v1641
        %v1645 = vpack.c.bf16 %v1644, %v1643
        %v1646 = vld [vmem:[%s8] sm:$0xf]
        %v1647 = vld [vmem:[%s8 + $0x4] sm:$0xf]
        %v1648 = vld [vmem:[%s8 + $0x8] sm:$0xf]
        %v1649 = vld [vmem:[%s8 + $0xc] sm:$0xf]
        %v1650 = vld [vmem:[%s9] sm:$0x1]
        %v1652 = vperm.slane %v1650, 0
        %v1658 = vunpack.c.l.b16 %v1646
        %v1659 = vunpack.c.l.b16 %v1647
        %v1660 = vunpack.c.l.b16 %v1648
        %v1661 = vunpack.c.l.b16 %v1649
        %v1662 = vpack.c.b16 %v1659, %v1658
        %v1663 = vpack.c.b16 %v1661, %v1660
        %v1667 = vsel %vm420, %v1645, 0
        %1669 = vmatpush.bf16.msra.mxu0 0
        %1670 = vmatpush.bf16.msra.mxu0 0
        %1671 = vmatpush.bf16.msra.mxu0 0
        %1672 = vmatpush.bf16.msra.mxu0 0
        %1673 = vmatpush.bf16.msra.mxu0 0
        %1674 = vmatpush.bf16.msra.mxu0 0
        %1675 = vmatpush.bf16.msra.mxu0 %v1663
        %1676 = vmatpush.bf16.msra.mxu0 %v1662
        %1677 = vmatmul.bf16.gmra.mxu0 %v1667
        %v1678 = vpop.f32.mrf.mxu0
        %v1679 = vadd.f32 %v1652, %v1678
        %v1680 = vpop.f32.mrf.mxu0
        %v1681 = vadd.f32 %v1652, %v1680
        %1682 = vdwg.mxu0
        %v1683 = vmul.f32 %v1679, 0.5
        %v1684 = vmul.f32 %v1681, 0.5
        %v1685 = vmul.f32 %v1679, 0.70710677
        %v1686 = vmul.f32 %v1681, 0.70710677
        %vm1687 = vcmp.ge.f32.partialorder %v1685, 0.0
        %vm1688 = vcmp.ge.f32.partialorder %v1686, 0.0
        %v1689 = vsel %vm1687, 1.0, -1.0
        %v1690 = vsel %vm1688, 1.0, -1.0
        %v1691 = vmul.f32 %v1685, %v1689
        %v1692 = vmul.f32 %v1686, %v1690
        %v1693 = vmul.f32 %v1691, 0.3275911
        %v1694 = vmul.f32 %v1692, 0.3275911
        %v1695 = vadd.f32 %v1693, 1.0
        %v1696 = vadd.f32 %v1694, 1.0
        %v1697 = vrcp.pop %v1695
        %v1698 = vrcp.pop %v1696
        %v1699 = vmul.f32 %v1697, 1.0614054
        %v1700 = vmul.f32 %v1698, 1.0614054
        %v1701 = vadd.f32 %v1699, -1.4531521
        %v1702 = vadd.f32 %v1700, -1.4531521
        %v1703 = vmul.f32 %v1701, %v1697
        %v1704 = vmul.f32 %v1702, %v1698
        %v1705 = vadd.f32 %v1703, 1.4214138
        %v1706 = vadd.f32 %v1704, 1.4214138
        %v1707 = vmul.f32 %v1705, %v1697
        %v1708 = vmul.f32 %v1706, %v1698
        %v1709 = vadd.f32 %v1707, -0.28449672
        %v1710 = vadd.f32 %v1708, -0.28449672
        %v1711 = vmul.f32 %v1709, %v1697
        %v1712 = vmul.f32 %v1710, %v1698
        %v1713 = vadd.f32 %v1711, 0.2548296
        %v1714 = vadd.f32 %v1712, 0.2548296
        %v1715 = vmul.f32 %v1713, %v1697
        %v1716 = vmul.f32 %v1714, %v1698
        %v1717 = vsub.f32 0.0, %v1691
        %v1718 = vsub.f32 0.0, %v1692
        %v1719 = vmul.f32 %v1717, %v1691
        %v1720 = vmul.f32 %v1718, %v1692
        %v1721 = vmul.f32 %v1719, 1.442695
        %v1722 = vpow.pop %v1721
        %v1723 = vmul.f32 %v1720, 1.442695
        %v1724 = vpow.pop %v1723
        %v1725 = vmul.f32 %v1715, %v1722
        %v1726 = vmul.f32 %v1716, %v1724
        %v1727 = vsub.f32 1.0, %v1725
        %v1728 = vsub.f32 1.0, %v1726
        %v1729 = vmul.f32 %v1689, %v1727
        %v1730 = vmul.f32 %v1690, %v1728
        %v1731 = vadd.f32 %v1729, 1.0
        %v1732 = vadd.f32 %v1730, 1.0
        %v1733 = vmul.f32 %v1683, %v1731
        %v1734 = vmul.f32 %v1684, %v1732
        %v1735 = vpack.c.bf16 %v1734, %v1733
        %v1736 = vld [vmem:[%s10] sm:$0xf]
        %v1737 = vld [vmem:[%s10 + $0x4] sm:$0xf]
        %v1738 = vld [vmem:[%s10 + $0x8] sm:$0xf]
        %v1739 = vld [vmem:[%s10 + $0xc] sm:$0xf]
        %v1740 = vld [vmem:[%s10 + $0x10] sm:$0xf]
        %v1741 = vld [vmem:[%s10 + $0x14] sm:$0xf]
        %v1742 = vld [vmem:[%s10 + $0x18] sm:$0xf]
        %v1743 = vld [vmem:[%s10 + $0x1c] sm:$0xf]
        %v1744 = vld [vmem:[%s11] sm:$0x1]
        %v1746 = vperm.slane %v1744, 0
        %v1756 = vunpack.c.l.b16 %v1736
        %v1757 = vunpack.c.l.b16 %v1737
        %v1758 = vunpack.c.l.b16 %v1738
        %v1759 = vunpack.c.l.b16 %v1739
        %v1760 = vunpack.c.l.b16 %v1740
        %v1761 = vunpack.c.l.b16 %v1741
        %v1762 = vunpack.c.l.b16 %v1742
        %v1763 = vunpack.c.l.b16 %v1743
        %v1764 = vpack.c.b16 %v1757, %v1756
        %v1765 = vpack.c.b16 %v1759, %v1758
        %v1766 = vpack.c.b16 %v1761, %v1760
        %v1767 = vpack.c.b16 %v1763, %v1762
        %vm1772 = vcmask 523264
        %v1774 = vsel %vm1772, %v1735, 0
        %1776 = vmatpush.bf16.msra.mxu0 0
        %1777 = vmatpush.bf16.msra.mxu0 0
        %1778 = vmatpush.bf16.msra.mxu0 0
        %1779 = vmatpush.bf16.msra.mxu0 0
        %1780 = vmatpush.bf16.msra.mxu0 %v1767
        %1781 = vmatpush.bf16.msra.mxu0 %v1766
        %1782 = vmatpush.bf16.msra.mxu0 %v1765
        %1783 = vmatpush.bf16.msra.mxu0 %v1764
        %1784 = vmatmul.bf16.gmra.mxu0 %v1774
        %v1785 = vpop.f32.mrf.mxu0
        %v1786 = vadd.f32 %v1746, %v1785
        %v1787 = vpop.f32.mrf.mxu0
        %v1788 = vadd.f32 %v1746, %v1787
        %1789 = vdwg.mxu0
        %v1790 = vadd.f32 %v1587, %v1786
        %v1791 = vadd.f32 %v1588, %v1788
        %1792 = vst.msk [vmem:[%s407] sm:$0xff] %vm420, %v1790
        %1793 = vst.msk [vmem:[%s407 + $0x8] sm:$0xff] %vm420, %v1791
        %s1794 = sand.u32 %s291, 1
        %s1795 = scalar_lea.sflag [#allocation3], %s1794
        %s1796 = sand.u32 %s291, 1
        %s1797 = smul.addr %s1796, 16
        %s1798 = scalar_lea.vmem [#allocation2], %s1797
        // Predicated region
        $region69: #{tpu_custom_call.1} parent=67 // pred_check
          %p1799 = pneg %p301
        $region70: #{tpu_custom_call.1} parent=67 // pred_check_branch
          %1801 = sbr.rel (%p1799) target = $region72
        $region71: #{tpu_custom_call.1} parent=67 // pred_region
          %s1802 = smul.u32 2, %s26
          %1804 = vsyncadd %s1795, 0
          %s1805 = smul.addr %s1802, 8
          %s1806 = scalar_lea.hbm %s12, %s1805
          %s1807 = sshll.u32 %s1798, 4
          %s1808 = int_to_ptr.vmem [resolvable:$true] %s1807
          %s1809 = sshll.u32 %s1806, 4
          %s1810 = int_to_ptr.hbm [resolvable:$true] %s1809
          %1815 = dma.vmem_to_hbm [thread:$0]  %s1808, 256, %s1810, %s1795, 128, 128, 8
        $region72: #{tpu_custom_call.1} parent=67 // pred_fallthru
          _
      $region68: #{tpu_custom_call.1} parent=5 // pred_fallthru
        _
      %p1816 = scmp.le.s32.totalorder 2, %s21
      // Predicated region
      $region73: #{tpu_custom_call.1} parent=5 // pred_check
        %p1817 = pneg %p1816
      $region74: #{tpu_custom_call.1} parent=5 // pred_check_branch
        %1819 = sbr.rel (%p1817) target = $region76
      $region75: #{tpu_custom_call.1} parent=5 // pred_region
        %s1820 = ssub.s32 %s21, 2
        // Predicated region
        $region77: #{tpu_custom_call.1} parent=75 // pred_check
          %p1821 = pneg %p307
        $region78: #{tpu_custom_call.1} parent=75 // pred_check_branch
          %1823 = sbr.rel (%p1821) target = $region80
        $region79: #{tpu_custom_call.1} parent=75 // pred_region
          %s1824 = sand.u32 %s292, 1
          %s1825 = scalar_lea.sflag [#allocation3], %s1824
          %s1826 = sand.u32 %s292, 1
          %s1827 = smul.addr %s1826, 16
          %s1828 = scalar_lea.vmem [#allocation2], %s1827
          %1830 = dma.done %s1825, 256
        $region80: #{tpu_custom_call.1} parent=75 // pred_fallthru
          _
      $region76: #{tpu_custom_call.1} parent=5 // pred_fallthru
        _
    $region6: #{tpu_custom_call.1} parent=1 // loop_footer
      %s25 = sadd.s32 1, %s21
    $region7: #{tpu_custom_call.1} parent=1 // loop_footer_branch
      %20 = sbr.rel target = $region3
    $region8: #{tpu_custom_call.1} parent=1 // loop_exit
      _
    %1831 = vsyncpa [#allocation3], 1
    %s1832 = scalar_lea.sflag [#allocation3], 1
    %1833 = vsyncpa %s1832, 1

</llo_original>
